<compile_context>
chip_gen: v5e
topology: v5e:2x2
jax: 0.10.0
libtpu: 0.0.40
codegen_flags: <defaults>
</compile_context>

<pallas_src>
from functools import partial

import jax
import jax.numpy as jnp
from jax import lax
from jax.experimental import pallas as pl
from jax.experimental.pallas import tpu as pltpu


# ---------------- Pallas kernels ----------------

def _matmul_bias_stats_kernel(a_ref, w_ref, b_ref, y_ref, ps_ref):
    """One (TM, K)x(K, Cout) tile: matmul + bias, plus per-tile sum / sum^2 (pre-bias).

    Zero-padded rows / K-columns of A contribute exactly 0 to the partial sums, so no
    validity masking is needed and every grid point is independent ("parallel")."""
    z = jnp.dot(a_ref[...], w_ref[...], preferred_element_type=jnp.float32)
    y_ref[...] = z + b_ref[...]
    zsum = jnp.sum(z, axis=0, keepdims=True)            # (1, Cout)
    zsq = jnp.sum(z * z, axis=0, keepdims=True)         # (1, Cout)
    ps_ref[...] = jnp.concatenate([zsum, zsq], axis=0)  # (2, Cout)


def _bn_lrelu_kernel(y_ref, sc_ref, sh_ref, o_ref, *, slope):
    """Fused BatchNorm (precomputed per-channel scale/shift, tiled along lanes) + LeakyReLU
    on a lane-dense slab (last dim = RB*Cout)."""
    z = y_ref[...] * sc_ref[...] + sh_ref[...]
    o_ref[...] = jnp.where(z >= 0, z, slope * z)


# ---------------- wrapper ----------------

@partial(jax.jit, static_argnames=("stride", "padding", "out_padding", "eps", "slope"))
def conv_unit_transpose(x, weight, bias, gamma, beta, *, stride, padding, out_padding,
                        eps=1e-5, slope=0.2):
    """Forward of ConvUnitTranspose.  x: (N, Cin, H, W) NCHW, weight: (Cin, Cout, k, k)."""
    N, Cin, H, W = x.shape
    Cin_w, Cout, kh, kw = weight.shape
    assert Cin == Cin_w and kh == kw
    k, s = kh, stride

    plo = k - 1 - padding
    phi = k - 1 - padding + out_padding
    assert plo >= 0 and phi >= 0, "padding > kernel-1 not supported here"

    Hd, Wd = (H - 1) * s + 1, (W - 1) * s + 1
    Hp, Wp = Hd + plo + phi, Wd + plo + phi
    OH, OW = Hp - k + 1, Wp - k + 1
    assert OH > 0 and OW > 0
    M = N * OH * OW

    # dilated + padded input: small (~s^2 x input); only used for cheap strided slices
    x_dil = jnp.zeros((N, Cin, Hd, Wd), x.dtype).at[:, :, ::s, ::s].set(x)
    x_pad = jnp.pad(x_dil, ((0, 0), (0, 0), (plo, phi), (plo, phi)))

    # flipped kernel as (Cin, k, k, Cout); row order (ci, a, b) matches im2col columns
    Wq = jnp.flip(weight, axis=(2, 3)).transpose(0, 2, 3, 1).astype(jnp.float32)

    # ---- sub-pixel residue groups (degenerates to a single group for stride == 1) ----
    groups = []   # (rh, rw, QH, QW, A_g, W_g)
    for rh in range(min(s, OH)):
        ah = (plo - rh) % s                      # live tap residue along H
        th = len(range(ah, k, s))                # number of live taps along H
        QH = len(range(rh, OH, s))               # output rows in this residue
        for rw in range(min(s, OW)):
            aw = (plo - rw) % s
            tw = len(range(aw, k, s))
            QW = len(range(rw, OW, s))
            Mg = N * QH * QW
            if th == 0 or tw == 0:               # stride > kernel: pure-bias outputs
                Ag = jnp.zeros((Mg, 0), jnp.float32)
                Wg = jnp.zeros((0, Cout), jnp.float32)
            else:
                # strided view of x_pad: exactly the (un-dilated) samples this residue sees
                xs = x_pad[:, :, rh + ah::s, rw + aw::s]
                cols = [xs[:, :, t:t + QH, u:u + QW]
                        for t in range(th) for u in range(tw)]
                Ag = jnp.stack(cols, axis=2)                         # (N, Cin, th*tw, QH, QW)
                Ag = Ag.transpose(0, 3, 4, 1, 2).reshape(Mg, Cin * th * tw).astype(jnp.float32)
                Wg = Wq[:, ah::s, aw::s, :].reshape(Cin * th * tw, Cout)
            groups.append((rh, rw, QH, QW, Ag, Wg))

    G = len(groups)
    Kp = max(1, max(g[4].shape[1] for g in groups))
    Mg_max = max(g[4].shape[0] for g in groups)

    # row tile: largest power of two <= 2048 fitting a conservative VMEM budget (v7x-safe)
    TM = max(8, min(2048, pl.next_power_of_2(Mg_max)))
    while TM > 8 and 8 * (TM * (Kp + Cout) + Kp * Cout) > (16 << 20):
        TM //= 2
    Mg_pad = pl.cdiv(Mg_max, TM) * TM
    nblk = Mg_pad // TM

    A_stack = jnp.stack([
        jnp.pad(g[4], ((0, Mg_pad - g[4].shape[0]), (0, Kp - g[4].shape[1])))
        for g in groups])                                   # (G, Mg_pad, Kp)
    W_stack = jnp.stack([
        jnp.pad(g[5], ((0, Kp - g[5].shape[0]), (0, 0)))
        for g in groups])                                   # (G, Kp, Cout)

    # ---- kernel 1: grouped matmul + bias + per-tile channel statistics ----
    y_stack, psums = pl.pallas_call(
        _matmul_bias_stats_kernel,
        out_shape=(jax.ShapeDtypeStruct((G, Mg_pad, Cout), jnp.float32),
                   jax.ShapeDtypeStruct((G, nblk, 2, Cout), jnp.float32)),
        grid_spec=pltpu.PrefetchScalarGridSpec(
            num_scalar_prefetch=0,
            grid=(G, nblk),
            in_specs=[pl.BlockSpec((None, TM, Kp), lambda g, i: (g, i, 0)),
                      pl.BlockSpec((None, Kp, Cout), lambda g, i: (g, 0, 0)),
                      pl.BlockSpec((1, Cout), lambda g, i: (0, 0))],
            out_specs=[pl.BlockSpec((None, TM, Cout), lambda g, i: (g, i, 0)),
                       pl.BlockSpec((None, None, 2, Cout), lambda g, i: (g, i, 0, 0))]),
        compiler_params=pltpu.CompilerParams(
            dimension_semantics=("parallel", "parallel"),
            vmem_limit_bytes=48 * 1024 * 1024),
    )(A_stack, W_stack, bias.astype(jnp.float32).reshape(1, Cout))

    # ---- batch-norm statistics from the tiny per-tile partials (PyTorch biased var) ----
    count = jnp.float32(M)
    zsum = jnp.sum(psums[:, :, 0, :], axis=(0, 1))
    zsq = jnp.sum(psums[:, :, 1, :], axis=(0, 1))
    mean_z = zsum / count
    var = jnp.maximum(zsq / count - mean_z * mean_z, 0.0)
    scale = gamma.astype(jnp.float32) * lax.rsqrt(var + eps)
    shift = beta.astype(jnp.float32) - (mean_z + bias.astype(jnp.float32)) * scale

    # ---- kernel 2: BN + LeakyReLU on a lane-dense view (last dim RB*Cout, not Cout) ----
    RB = 1
    while RB * 2 * Cout <= 512 and RB * 2 <= TM:
        RB *= 2                                  # power of two, divides TM (hence Mg_pad)
    LANE = RB * Cout
    rows2 = (G * Mg_pad) // RB
    Yd = y_stack.reshape(rows2, LANE)            # layout-preserving reshape

    max_rows = max(8, ((2 * 1024 * 1024) // (LANE * 4)) // 8 * 8)
    TR = rows2 if rows2 <= max_rows else max_rows

    out2 = pl.pallas_call(
        partial(_bn_lrelu_kernel, slope=slope),
        out_shape=jax.ShapeDtypeStruct((rows2, LANE), jnp.float32),
        grid_spec=pltpu.PrefetchScalarGridSpec(
            num_scalar_prefetch=0,
            grid=(pl.cdiv(rows2, TR),),
            in_specs=[pl.BlockSpec((TR, LANE), lambda i: (i, 0)),
                      pl.BlockSpec((1, LANE), lambda i: (0, 0)),
                      pl.BlockSpec((1, LANE), lambda i: (0, 0))],
            out_specs=pl.BlockSpec((TR, LANE), lambda i: (i, 0))),
        compiler_params=pltpu.CompilerParams(
            dimension_semantics=("parallel",),
            vmem_limit_bytes=48 * 1024 * 1024),
        input_output_aliases={0: 0},
    )(Yd,
      jnp.tile(scale, RB).reshape(1, LANE),
      jnp.tile(shift, RB).reshape(1, LANE))

    # ---- interleave the residue sub-grids back into NCHW ----
    y3 = out2.reshape(G, Mg_pad, Cout)
    y_nhwc = jnp.zeros((N, OH, OW, Cout), jnp.float32)
    for gi, (rh, rw, QH, QW, _, _) in enumerate(groups):
        blk = y3[gi, :N * QH * QW].reshape(N, QH, QW, Cout)
        y_nhwc = y_nhwc.at[:, rh::s, rw::s, :].set(blk)
    return y_nhwc.transpose(0, 3, 1, 2)


# ---------------- pure-JAX reference (independent of the decomposition above) ----------------

def reference(x, weight, bias, gamma, beta, *, stride, padding, out_padding,
              eps=1e-5, slope=0.2):
    k = weight.shape[2]
    Wf = jnp.flip(weight, axis=(2, 3)).transpose(1, 0, 2, 3)        # OIHW
    pad = (k - 1 - padding, k - 1 - padding + out_padding)
    y = lax.conv_general_dilated(
        x, Wf, window_strides=(1, 1), padding=(pad, pad),
        lhs_dilation=(stride, stride),
        dimension_numbers=('NCHW', 'OIHW', 'NCHW'))
    y = y + bias.reshape(1, -1, 1, 1)
    mean = jnp.mean(y, axis=(0, 2, 3), keepdims=True)
    var = jnp.var(y, axis=(0, 2, 3), keepdims=True)
    z = (y - mean) * lax.rsqrt(var + eps) * gamma.reshape(1, -1, 1, 1) + beta.reshape(1, -1, 1, 1)
    return jnp.where(z >= 0, z, slope * z)


if __name__ == "__main__":
    # ConvUnitTranspose(4, 8, kernel=4, stride=2, padding=1, out_padding=0,
    #                   batchnorm=True, nonlinearity=LeakyReLU(0.2))
    N, Cin, H, W = 2, 4, 16, 16
    Cout, k, stride, padding, out_padding = 8, 4, 2, 1, 0

    key = jax.random.PRNGKey(0)
    kx, kw, kb = jax.random.split(key, 3)
    x = jax.random.normal(kx, (N, Cin, H, W), jnp.float32)
    weight = jax.random.normal(kw, (Cin, Cout, k, k), jnp.float32) * 0.1  # ConvTranspose2d weight
    bias = jax.random.normal(kb, (Cout,), jnp.float32) * 0.1
    gamma = jnp.ones((Cout,), jnp.float32)     # BatchNorm2d default init
    beta = jnp.zeros((Cout,), jnp.float32)

    out = conv_unit_transpose(x, weight, bias, gamma, beta,
                              stride=stride, padding=padding, out_padding=out_padding)
    out = jax.block_until_ready(out)

    ref = reference(x, weight, bias, gamma, beta,
                    stride=stride, padding=padding, out_padding=out_padding)
    assert out.shape == (N, Cout, (H - 1) * stride - 2 * padding + k + out_padding,
                         (W - 1) * stride - 2 * padding + k + out_padding)
    assert jnp.max(jnp.abs(out - ref)) < 1e-3, float(jnp.max(jnp.abs(out - ref)))

    # TODO(synk): BatchNorm2d running_mean/running_var buffer updates (training-time side
    # effect) are not emitted; they do not affect the forward output.
    print("KERNEL_OK")
</pallas_src>

<mosaic_0001>
module attributes {stable_mosaic.version = 11 : i64} {
  func.func @_matmul_bias_stats_kernel(%arg0: i32, %arg1: i32, %arg2: memref<1x512x16xf32, #tpu.memory_space<vmem>>, %arg3: memref<1x16x8xf32, #tpu.memory_space<vmem>>, %arg4: memref<1x8xf32, #tpu.memory_space<vmem>>, %arg5: memref<1x512x8xf32, #tpu.memory_space<vmem>>, %arg6: memref<1x1x2x8xf32, #tpu.memory_space<vmem>>) attributes {dimension_semantics = [#tpu.dimension_semantics<parallel>, #tpu.dimension_semantics<parallel>], iteration_bounds = array<i64: 4, 1>, scalar_prefetch = 0 : i64, scratch_operands = 0 : i64, tpu.core_type = #tpu.core_type<tc>, window_params = [{transform_indices = @transform_0, window_bounds = array<i64: 1, 512, 16>}, {transform_indices = @transform_1, window_bounds = array<i64: 1, 16, 8>}, {pipeline_mode = #tpu.pipeline_mode<synchronous>, transform_indices = @transform_2, window_bounds = array<i64: 1, 8>}, {transform_indices = @transform_3, window_bounds = array<i64: 1, 512, 8>}, {transform_indices = @transform_4, window_bounds = array<i64: 1, 1, 2, 8>}]} {
    %c0 = arith.constant 0 : index
    %c0_0 = arith.constant 0 : index
    %c0_1 = arith.constant 0 : index
    %0 = vector.load %arg2[%c0, %c0_0, %c0_1] : memref<1x512x16xf32, #tpu.memory_space<vmem>>, vector<1x512x16xf32>
    %1 = vector.shape_cast %0 : vector<1x512x16xf32> to vector<512x16xf32>
    %c0_2 = arith.constant 0 : index
    %c0_3 = arith.constant 0 : index
    %c0_4 = arith.constant 0 : index
    %2 = vector.load %arg3[%c0_2, %c0_3, %c0_4] : memref<1x16x8xf32, #tpu.memory_space<vmem>>, vector<1x16x8xf32>
    %3 = vector.shape_cast %2 : vector<1x16x8xf32> to vector<16x8xf32>
    %cst = arith.constant dense<0.000000e+00> : vector<512x8xf32>
    %4 = tpu.matmul %1, %3, %cst {dimension_numbers = #tpu.dot_dimension_numbers<[1], [0], [0], [1], [0, 0, 1, 1], [], []>} : vector<512x16xf32>, vector<16x8xf32>, vector<512x8xf32> -> vector<512x8xf32>
    %c0_5 = arith.constant 0 : index
    %c0_6 = arith.constant 0 : index
    %5 = vector.load %arg4[%c0_5, %c0_6] : memref<1x8xf32, #tpu.memory_space<vmem>>, vector<1x8xf32>
    %6 = vector.broadcast %5 : vector<1x8xf32> to vector<512x8xf32>
    %7 = arith.addf %4, %6 : vector<512x8xf32>
    %c0_7 = arith.constant 0 : index
    %c0_8 = arith.constant 0 : index
    %c0_9 = arith.constant 0 : index
    %8 = vector.load %arg5[%c0_7, %c0_8, %c0_9] : memref<1x512x8xf32, #tpu.memory_space<vmem>>, vector<1x512x8xf32>
    %9 = vector.shape_cast %8 : vector<1x512x8xf32> to vector<512x8xf32>
    %10 = vector.shape_cast %7 : vector<512x8xf32> to vector<1x512x8xf32>
    tpu.vector_store %arg5[%c0_7, %c0_8, %c0_9], %10 {strides = array<i32>} : memref<1x512x8xf32, #tpu.memory_space<vmem>>, vector<1x512x8xf32>,
    %cst_10 = arith.constant dense<0.000000e+00> : vector<8xf32>
    %11 = vector.multi_reduction <add>, %4, %cst_10 [0] : vector<512x8xf32> to vector<8xf32>
    %12 = vector.shape_cast %11 : vector<8xf32> to vector<1x8xf32>
    %13 = arith.mulf %4, %4 : vector<512x8xf32>
    %cst_11 = arith.constant dense<0.000000e+00> : vector<8xf32>
    %14 = vector.multi_reduction <add>, %13, %cst_11 [0] : vector<512x8xf32> to vector<8xf32>
    %15 = vector.shape_cast %14 : vector<8xf32> to vector<1x8xf32>
    %16 = tpu.concatenate %12, %15 in 0 : vector<1x8xf32>, vector<1x8xf32> -> vector<2x8xf32>
    %c0_12 = arith.constant 0 : index
    %c0_13 = arith.constant 0 : index
    %c0_14 = arith.constant 0 : index
    %c0_15 = arith.constant 0 : index
    %17 = vector.load %arg6[%c0_12, %c0_13, %c0_14, %c0_15] : memref<1x1x2x8xf32, #tpu.memory_space<vmem>>, vector<1x1x2x8xf32>
    %18 = vector.shape_cast %17 : vector<1x1x2x8xf32> to vector<2x8xf32>
    %19 = vector.shape_cast %16 : vector<2x8xf32> to vector<1x1x2x8xf32>
    tpu.vector_store %arg6[%c0_12, %c0_13, %c0_14, %c0_15], %19 {strides = array<i32>} : memref<1x1x2x8xf32, #tpu.memory_space<vmem>>, vector<1x1x2x8xf32>,
    return
  }
  func.func @transform_0(%arg0: i32, %arg1: i32) -> (i32, i32, i32) {
    %c0_i32 = arith.constant 0 : i32
    %c0_i32_0 = arith.constant 0 : i32
    return %arg0, %arg1, %c0_i32 : i32, i32, i32
  }
  func.func @transform_1(%arg0: i32, %arg1: i32) -> (i32, i32, i32) {
    %c0_i32 = arith.constant 0 : i32
    %c0_i32_0 = arith.constant 0 : i32
    %c0_i32_1 = arith.constant 0 : i32
    return %arg0, %c0_i32, %c0_i32_0 : i32, i32, i32
  }
  func.func @transform_2(%arg0: i32, %arg1: i32) -> (i32, i32) {
    %c0_i32 = arith.constant 0 : i32
    %c0_i32_0 = arith.constant 0 : i32
    %c0_i32_1 = arith.constant 0 : i32
    return %c0_i32, %c0_i32_0 : i32, i32
  }
  func.func @transform_3(%arg0: i32, %arg1: i32) -> (i32, i32, i32) {
    %c0_i32 = arith.constant 0 : i32
    %c0_i32_0 = arith.constant 0 : i32
    return %arg0, %arg1, %c0_i32 : i32, i32, i32
  }
  func.func @transform_4(%arg0: i32, %arg1: i32) -> (i32, i32, i32, i32) {
    %c0_i32 = arith.constant 0 : i32
    %c0_i32_0 = arith.constant 0 : i32
    %c0_i32_1 = arith.constant 0 : i32
    return %arg0, %arg1, %c0_i32, %c0_i32_0 : i32, i32, i32, i32
  }
}

module attributes {stable_mosaic.version = 11 : i64} {
  func.func @_bn_lrelu_kernel(%arg0: i32, %arg1: memref<32x512xf32, #tpu.memory_space<vmem>>, %arg2: memref<1x512xf32, #tpu.memory_space<vmem>>, %arg3: memref<1x512xf32, #tpu.memory_space<vmem>>, %arg4: memref<32x512xf32, #tpu.memory_space<vmem>>) attributes {dimension_semantics = [#tpu.dimension_semantics<parallel>], iteration_bounds = array<i64: 1>, scalar_prefetch = 0 : i64, scratch_operands = 0 : i64, tpu.core_type = #tpu.core_type<tc>, window_params = [{transform_indices = @transform_0, window_bounds = array<i64: 32, 512>}, {pipeline_mode = #tpu.pipeline_mode<synchronous>, transform_indices = @transform_1, window_bounds = array<i64: 1, 512>}, {pipeline_mode = #tpu.pipeline_mode<synchronous>, transform_indices = @transform_2, window_bounds = array<i64: 1, 512>}, {transform_indices = @transform_3, window_bounds = array<i64: 32, 512>}]} {
    %c0 = arith.constant 0 : index
    %c0_0 = arith.constant 0 : index
    %0 = vector.load %arg1[%c0, %c0_0] : memref<32x512xf32, #tpu.memory_space<vmem>>, vector<32x512xf32>
    %c0_1 = arith.constant 0 : index
    %c0_2 = arith.constant 0 : index
    %1 = vector.load %arg2[%c0_1, %c0_2] : memref<1x512xf32, #tpu.memory_space<vmem>>, vector<1x512xf32>
    %2 = vector.broadcast %1 : vector<1x512xf32> to vector<32x512xf32>
    %3 = arith.mulf %0, %2 : vector<32x512xf32>
    %c0_3 = arith.constant 0 : index
    %c0_4 = arith.constant 0 : index
    %4 = vector.load %arg3[%c0_3, %c0_4] : memref<1x512xf32, #tpu.memory_space<vmem>>, vector<1x512xf32>
    %5 = vector.broadcast %4 : vector<1x512xf32> to vector<32x512xf32>
    %6 = arith.addf %3, %5 : vector<32x512xf32>
    %cst = arith.constant 0.000000e+00 : f32
    %7 = vector.broadcast %cst : f32 to vector<32x512xf32>
    %8 = arith.cmpf oge, %6, %7 : vector<32x512xf32>
    %cst_5 = arith.constant 2.000000e-01 : f32
    %9 = vector.broadcast %cst_5 : f32 to vector<32x512xf32>
    %10 = arith.mulf %9, %6 : vector<32x512xf32>
    %11 = arith.select %8, %6, %10 : vector<32x512xi1>, vector<32x512xf32>
    %c0_6 = arith.constant 0 : index
    %c0_7 = arith.constant 0 : index
    %12 = vector.load %arg4[%c0_6, %c0_7] : memref<32x512xf32, #tpu.memory_space<vmem>>, vector<32x512xf32>
    tpu.vector_store %arg4[%c0_6, %c0_7], %11 {strides = array<i32>} : memref<32x512xf32, #tpu.memory_space<vmem>>, vector<32x512xf32>,
    return
  }
  func.func @transform_0(%arg0: i32) -> (i32, i32) {
    %c0_i32 = arith.constant 0 : i32
    %c0_i32_0 = arith.constant 0 : i32
    return %arg0, %c0_i32 : i32, i32
  }
  func.func @transform_1(%arg0: i32) -> (i32, i32) {
    %c0_i32 = arith.constant 0 : i32
    %c0_i32_0 = arith.constant 0 : i32
    %c0_i32_1 = arith.constant 0 : i32
    return %c0_i32, %c0_i32_0 : i32, i32
  }
  func.func @transform_2(%arg0: i32) -> (i32, i32) {
    %c0_i32 = arith.constant 0 : i32
    %c0_i32_0 = arith.constant 0 : i32
    %c0_i32_1 = arith.constant 0 : i32
    return %c0_i32, %c0_i32_0 : i32, i32
  }
  func.func @transform_3(%arg0: i32) -> (i32, i32) {
    %c0_i32 = arith.constant 0 : i32
    %c0_i32_0 = arith.constant 0 : i32
    return %arg0, %c0_i32 : i32, i32
  }
}

</mosaic_0001>

<llo_original>
// kernel: tile.18
$region0: #{tile.18}
  #allocation0 [shape = 's32[1]{0}', space=sflag, size = 0x4, scoped, tag = 'scoped memory for tile.18']
  %s0 = inlined_call_operand.vmem [shape: f32[8], index: 0, kind: input, shape index: {}]
  %s1 = inlined_call_operand.vmem [shape: f32[64,8], index: 1, kind: output, shape index: {}]
  // Predicated region
  $region2: #{tile.18} parent=0 // pred_check
    _
  $region3: #{tile.18} parent=0 // pred_check_branch
    %3 = sbr.rel (0) target = $region5
  $region4: #{tile.18} parent=0 // pred_region
    _
  $region5: #{tile.18} parent=0 // pred_fallthru
    _
  %v4 = vld [vmem:[%s0] ss:$0 sm:$0xff]
  %5 = vst [vmem:[%s1] sm:$0xff] %v4
  %s6 = scalar_lea.vmem %s1, 8
  %7 = vst [vmem:[%s6] sm:$0xff] %v4
  %s8 = scalar_lea.vmem %s1, 16
  %9 = vst [vmem:[%s8] sm:$0xff] %v4
  %s10 = scalar_lea.vmem %s1, 24
  %11 = vst [vmem:[%s10] sm:$0xff] %v4
  %s12 = scalar_lea.vmem %s1, 32
  %13 = vst [vmem:[%s12] sm:$0xff] %v4
  %s14 = scalar_lea.vmem %s1, 40
  %15 = vst [vmem:[%s14] sm:$0xff] %v4
  %s16 = scalar_lea.vmem %s1, 48
  %17 = vst [vmem:[%s16] sm:$0xff] %v4
  %s18 = scalar_lea.vmem %s1, 56
  %19 = vst [vmem:[%s18] sm:$0xff] %v4

// kernel: tile.19
$region0: #{tile.19}
  %s0 = inlined_call_operand.vmem [shape: f32[64,8], index: 0, kind: input, shape index: {}]
  %s1 = inlined_call_operand.vmem [shape: f32[1,512], index: 1, kind: output, shape index: {}]
  $region1: #{tile.19} parent=0
    #allocation0 [shape = 'u8[16384]{0}', space=vmem, size = 0x4000, scoped, tag = 'scoped mem for output reshape']
    %s2 = smov 3
    %v3 = vld [vmem:[%s0] ss:$16 sm:%s2]
    %s4 = smov 12
    %v5 = vld [vmem:[%s0] ss:$16 sm:%s4]
    %vm6 = vcmask 1043458
    %v7 = vsel %vm6, %v5, %v3
    %vm8 = vcmask 64512
    %9 = vst.msk [vmem:[#allocation0] ss:$8 sm:$0xf] %vm8, %v7
    %s10 = scalar_lea.vmem %s0, 15
    %s11 = smov 3
    %v12 = vld [vmem:[%s10] ss:$16 sm:%s11]
    %s13 = scalar_lea.vmem %s0, 15
    %s14 = smov 12
    %v15 = vld [vmem:[%s13] ss:$16 sm:%s14]
    %vm16 = vcmask 1043458
    %v17 = vsel %vm16, %v15, %v12
    %18 = vrot.lane.b32.xlu0 %v17, 120
    %v19 = vpop.permute.xlu0 %18
    %vm20 = vcmask 1048512
    %21 = vst.msk [vmem:[#allocation0] ss:$8 sm:$0xf] %vm20, %v19
    %s22 = scalar_lea.vmem %s0, 14
    %s23 = smov 3
    %v24 = vld [vmem:[%s22] ss:$16 sm:%s23]
    %s25 = scalar_lea.vmem %s0, 14
    %s26 = smov 12
    %v27 = vld [vmem:[%s25] ss:$16 sm:%s26]
    %vm28 = vcmask 1043458
    %v29 = vsel %vm28, %v27, %v24
    %30 = vrot.lane.b32.xlu0 %v29, 112
    %v31 = vpop.permute.xlu0 %30
    %vm32 = vcmask 982912
    %33 = vst.msk [vmem:[#allocation0] ss:$8 sm:$0xf] %vm32, %v31
    %s34 = scalar_lea.vmem %s0, 13
    %s35 = smov 3
    %v36 = vld [vmem:[%s34] ss:$16 sm:%s35]
    %s37 = scalar_lea.vmem %s0, 13
    %s38 = smov 12
    %v39 = vld [vmem:[%s37] ss:$16 sm:%s38]
    %vm40 = vcmask 1043458
    %v41 = vsel %vm40, %v39, %v36
    %42 = vrot.lane.b32.xlu0 %v41, 104
    %v43 = vpop.permute.xlu0 %42
    %vm44 = vcmask 917312
    %45 = vst.msk [vmem:[#allocation0] ss:$8 sm:$0xf] %vm44, %v43
    %s46 = scalar_lea.vmem %s0, 12
    %s47 = smov 3
    %v48 = vld [vmem:[%s46] ss:$16 sm:%s47]
    %s49 = scalar_lea.vmem %s0, 12
    %s50 = smov 12
    %v51 = vld [vmem:[%s49] ss:$16 sm:%s50]
    %vm52 = vcmask 1043458
    %v53 = vsel %vm52, %v51, %v48
    %54 = vrot.lane.b32.xlu0 %v53, 96
    %v55 = vpop.permute.xlu0 %54
    %vm56 = vcmask 851712
    %57 = vst.msk [vmem:[#allocation0] ss:$8 sm:$0xf] %vm56, %v55
    %s58 = scalar_lea.vmem %s0, 11
    %s59 = smov 3
    %v60 = vld [vmem:[%s58] ss:$16 sm:%s59]
    %s61 = scalar_lea.vmem %s0, 11
    %s62 = smov 12
    %v63 = vld [vmem:[%s61] ss:$16 sm:%s62]
    %vm64 = vcmask 1043458
    %v65 = vsel %vm64, %v63, %v60
    %66 = vrot.lane.b32.xlu0 %v65, 88
    %v67 = vpop.permute.xlu0 %66
    %vm68 = vcmask 786112
    %69 = vst.msk [vmem:[#allocation0] ss:$8 sm:$0xf] %vm68, %v67
    %s70 = scalar_lea.vmem %s0, 10
    %s71 = smov 3
    %v72 = vld [vmem:[%s70] ss:$16 sm:%s71]
    %s73 = scalar_lea.vmem %s0, 10
    %s74 = smov 12
    %v75 = vld [vmem:[%s73] ss:$16 sm:%s74]
    %vm76 = vcmask 1043458
    %v77 = vsel %vm76, %v75, %v72
    %78 = vrot.lane.b32.xlu0 %v77, 80
    %v79 = vpop.permute.xlu0 %78
    %vm80 = vcmask 720512
    %81 = vst.msk [vmem:[#allocation0] ss:$8 sm:$0xf] %vm80, %v79
    %s82 = scalar_lea.vmem %s0, 9
    %s83 = smov 3
    %v84 = vld [vmem:[%s82] ss:$16 sm:%s83]
    %s85 = scalar_lea.vmem %s0, 9
    %s86 = smov 12
    %v87 = vld [vmem:[%s85] ss:$16 sm:%s86]
    %vm88 = vcmask 1043458
    %v89 = vsel %vm88, %v87, %v84
    %90 = vrot.lane.b32.xlu0 %v89, 72
    %v91 = vpop.permute.xlu0 %90
    %vm92 = vcmask 654912
    %93 = vst.msk [vmem:[#allocation0] ss:$8 sm:$0xf] %vm92, %v91
    %s94 = scalar_lea.vmem %s0, 8
    %s95 = smov 3
    %v96 = vld [vmem:[%s94] ss:$16 sm:%s95]
    %s97 = scalar_lea.vmem %s0, 8
    %s98 = smov 12
    %v99 = vld [vmem:[%s97] ss:$16 sm:%s98]
    %vm100 = vcmask 1043458
    %v101 = vsel %vm100, %v99, %v96
    %102 = vrot.lane.b32.xlu0 %v101, 64
    %v103 = vpop.permute.xlu0 %102
    %vm104 = vcmask 589312
    %105 = vst.msk [vmem:[#allocation0] ss:$8 sm:$0xf] %vm104, %v103
    %s106 = scalar_lea.vmem %s0, 7
    %s107 = smov 3
    %v108 = vld [vmem:[%s106] ss:$16 sm:%s107]
    %s109 = scalar_lea.vmem %s0, 7
    %s110 = smov 12
    %v111 = vld [vmem:[%s109] ss:$16 sm:%s110]
    %vm112 = vcmask 1043458
    %v113 = vsel %vm112, %v111, %v108
    %114 = vrot.lane.b32.xlu0 %v113, 56
    %v115 = vpop.permute.xlu0 %114
    %vm116 = vcmask 523712
    %117 = vst.msk [vmem:[#allocation0] ss:$8 sm:$0xf] %vm116, %v115
    %s118 = scalar_lea.vmem %s0, 6
    %s119 = smov 3
    %v120 = vld [vmem:[%s118] ss:$16 sm:%s119]
    %s121 = scalar_lea.vmem %s0, 6
    %s122 = smov 12
    %v123 = vld [vmem:[%s121] ss:$16 sm:%s122]
    %vm124 = vcmask 1043458
    %v125 = vsel %vm124, %v123, %v120
    %126 = vrot.lane.b32.xlu0 %v125, 48
    %v127 = vpop.permute.xlu0 %126
    %vm128 = vcmask 458112
    %129 = vst.msk [vmem:[#allocation0] ss:$8 sm:$0xf] %vm128, %v127
    %s130 = scalar_lea.vmem %s0, 5
    %s131 = smov 3
    %v132 = vld [vmem:[%s130] ss:$16 sm:%s131]
    %s133 = scalar_lea.vmem %s0, 5
    %s134 = smov 12
    %v135 = vld [vmem:[%s133] ss:$16 sm:%s134]
    %vm136 = vcmask 1043458
    %v137 = vsel %vm136, %v135, %v132
    %138 = vrot.lane.b32.xlu0 %v137, 40
    %v139 = vpop.permute.xlu0 %138
    %vm140 = vcmask 392512
    %141 = vst.msk [vmem:[#allocation0] ss:$8 sm:$0xf] %vm140, %v139
    %s142 = scalar_lea.vmem %s0, 4
    %s143 = smov 3
    %v144 = vld [vmem:[%s142] ss:$16 sm:%s143]
    %s145 = scalar_lea.vmem %s0, 4
    %s146 = smov 12
    %v147 = vld [vmem:[%s145] ss:$16 sm:%s146]
    %vm148 = vcmask 1043458
    %v149 = vsel %vm148, %v147, %v144
    %150 = vrot.lane.b32.xlu0 %v149, 32
    %v151 = vpop.permute.xlu0 %150
    %vm152 = vcmask 326912
    %153 = vst.msk [vmem:[#allocation0] ss:$8 sm:$0xf] %vm152, %v151
    %s154 = scalar_lea.vmem %s0, 3
    %s155 = smov 3
    %v156 = vld [vmem:[%s154] ss:$16 sm:%s155]
    %s157 = scalar_lea.vmem %s0, 3
    %s158 = smov 12
    %v159 = vld [vmem:[%s157] ss:$16 sm:%s158]
    %vm160 = vcmask 1043458
    %v161 = vsel %vm160, %v159, %v156
    %162 = vrot.lane.b32.xlu0 %v161, 24
    %v163 = vpop.permute.xlu0 %162
    %vm164 = vcmask 261312
    %165 = vst.msk [vmem:[#allocation0] ss:$8 sm:$0xf] %vm164, %v163
    %s166 = scalar_lea.vmem %s0, 2
    %s167 = smov 3
    %v168 = vld [vmem:[%s166] ss:$16 sm:%s167]
    %s169 = scalar_lea.vmem %s0, 2
    %s170 = smov 12
    %v171 = vld [vmem:[%s169] ss:$16 sm:%s170]
    %vm172 = vcmask 1043458
    %v173 = vsel %vm172, %v171, %v168
    %174 = vrot.lane.b32.xlu0 %v173, 16
    %v175 = vpop.permute.xlu0 %174
    %vm176 = vcmask 195712
    %177 = vst.msk [vmem:[#allocation0] ss:$8 sm:$0xf] %vm176, %v175
    %s178 = scalar_lea.vmem %s0, 1
    %s179 = smov 3
    %v180 = vld [vmem:[%s178] ss:$16 sm:%s179]
    %s181 = scalar_lea.vmem %s0, 1
    %s182 = smov 12
    %v183 = vld [vmem:[%s181] ss:$16 sm:%s182]
    %vm184 = vcmask 1043458
    %v185 = vsel %vm184, %v183, %v180
    %186 = vrot.lane.b32.xlu0 %v185, 8
    %v187 = vpop.permute.xlu0 %186
    %vm188 = vcmask 130112
    %189 = vst.msk [vmem:[#allocation0] ss:$8 sm:$0xf] %vm188, %v187
    %s191 = ssub.s32 2, 1
    %v192 = vld [vmem:[#allocation0] sm:%s191]
    %s194 = ssub.s32 2, 1
    %195 = vst [vmem:[%s1] sm:%s194] %v192
    %s196 = scalar_lea.vmem [#allocation0], 8
    %v197 = vld [vmem:[%s196] sm:%s191]
    %s199 = ssub.s32 2, 1
    %s200 = scalar_lea.vmem %s1, 1
    %201 = vst [vmem:[%s200] sm:%s199] %v197
    %s202 = scalar_lea.vmem [#allocation0], 16
    %v203 = vld [vmem:[%s202] sm:%s191]
    %s205 = ssub.s32 2, 1
    %s206 = scalar_lea.vmem %s1, 2
    %207 = vst [vmem:[%s206] sm:%s205] %v203
    %s208 = scalar_lea.vmem [#allocation0], 24
    %v209 = vld [vmem:[%s208] sm:%s191]
    %s211 = ssub.s32 2, 1
    %s212 = scalar_lea.vmem %s1, 3
    %213 = vst [vmem:[%s212] sm:%s211] %v209

// kernel: squeeze.8
$region0: #{squeeze.8}
  %s0 = inlined_call_operand.vmem [shape: f32[8,512], index: 0, kind: input, shape index: {}]
  %s1 = inlined_call_operand.vmem [shape: f32[2,16,16,8], index: 1, kind: output, shape index: {}]
  %v2 = vld [vmem:[%s0] sm:$0xff]
  %vm3 = vcmask 64512
  %4 = vst.msk [vmem:[%s1] sm:$0x1] %vm3, %v2
  %s5 = scalar_lea.vmem %s1, 63
  %6 = vst.msk [vmem:[%s5] sm:$0x2] %vm3, %v2
  %s7 = scalar_lea.vmem %s1, 126
  %8 = vst.msk [vmem:[%s7] sm:$0x4] %vm3, %v2
  %s9 = scalar_lea.vmem %s1, 189
  %10 = vst.msk [vmem:[%s9] sm:$0x8] %vm3, %v2
  %s11 = scalar_lea.vmem %s1, 252
  %12 = vst.msk [vmem:[%s11] sm:$0x10] %vm3, %v2
  %s13 = scalar_lea.vmem %s1, 315
  %14 = vst.msk [vmem:[%s13] sm:$0x20] %vm3, %v2
  %s15 = scalar_lea.vmem %s1, 378
  %16 = vst.msk [vmem:[%s15] sm:$0x40] %vm3, %v2
  %s17 = scalar_lea.vmem %s1, 441
  %18 = vst.msk [vmem:[%s17] sm:$0x80] %vm3, %v2
  %s19 = scalar_lea.vmem %s0, 8
  %v20 = vld [vmem:[%s19] sm:$0xff]
  %vm21 = vcmask 64512
  %s22 = scalar_lea.vmem %s1, 16
  %23 = vst.msk [vmem:[%s22] sm:$0x1] %vm21, %v20
  %s24 = scalar_lea.vmem %s1, 79
  %25 = vst.msk [vmem:[%s24] sm:$0x2] %vm21, %v20
  %s26 = scalar_lea.vmem %s1, 142
  %27 = vst.msk [vmem:[%s26] sm:$0x4] %vm21, %v20
  %s28 = scalar_lea.vmem %s1, 205
  %29 = vst.msk [vmem:[%s28] sm:$0x8] %vm21, %v20
  %s30 = scalar_lea.vmem %s1, 268
  %31 = vst.msk [vmem:[%s30] sm:$0x10] %vm21, %v20
  %s32 = scalar_lea.vmem %s1, 331
  %33 = vst.msk [vmem:[%s32] sm:$0x20] %vm21, %v20
  %s34 = scalar_lea.vmem %s1, 394
  %35 = vst.msk [vmem:[%s34] sm:$0x40] %vm21, %v20
  %s36 = scalar_lea.vmem %s1, 457
  %37 = vst.msk [vmem:[%s36] sm:$0x80] %vm21, %v20
  %s38 = scalar_lea.vmem %s0, 16
  %v39 = vld [vmem:[%s38] sm:$0xff]
  %vm40 = vcmask 64512
  %s41 = scalar_lea.vmem %s1, 32
  %42 = vst.msk [vmem:[%s41] sm:$0x1] %vm40, %v39
  %s43 = scalar_lea.vmem %s1, 95
  %44 = vst.msk [vmem:[%s43] sm:$0x2] %vm40, %v39
  %s45 = scalar_lea.vmem %s1, 158
  %46 = vst.msk [vmem:[%s45] sm:$0x4] %vm40, %v39
  %s47 = scalar_lea.vmem %s1, 221
  %48 = vst.msk [vmem:[%s47] sm:$0x8] %vm40, %v39
  %s49 = scalar_lea.vmem %s1, 284
  %50 = vst.msk [vmem:[%s49] sm:$0x10] %vm40, %v39
  %s51 = scalar_lea.vmem %s1, 347
  %52 = vst.msk [vmem:[%s51] sm:$0x20] %vm40, %v39
  %s53 = scalar_lea.vmem %s1, 410
  %54 = vst.msk [vmem:[%s53] sm:$0x40] %vm40, %v39
  %s55 = scalar_lea.vmem %s1, 473
  %56 = vst.msk [vmem:[%s55] sm:$0x80] %vm40, %v39
  %s57 = scalar_lea.vmem %s0, 24
  %v58 = vld [vmem:[%s57] sm:$0xff]
  %vm59 = vcmask 64512
  %s60 = scalar_lea.vmem %s1, 48
  %61 = vst.msk [vmem:[%s60] sm:$0x1] %vm59, %v58
  %s62 = scalar_lea.vmem %s1, 111
  %63 = vst.msk [vmem:[%s62] sm:$0x2] %vm59, %v58
  %s64 = scalar_lea.vmem %s1, 174
  %65 = vst.msk [vmem:[%s64] sm:$0x4] %vm59, %v58
  %s66 = scalar_lea.vmem %s1, 237
  %67 = vst.msk [vmem:[%s66] sm:$0x8] %vm59, %v58
  %s68 = scalar_lea.vmem %s1, 300
  %69 = vst.msk [vmem:[%s68] sm:$0x10] %vm59, %v58
  %s70 = scalar_lea.vmem %s1, 363
  %71 = vst.msk [vmem:[%s70] sm:$0x20] %vm59, %v58
  %s72 = scalar_lea.vmem %s1, 426
  %73 = vst.msk [vmem:[%s72] sm:$0x40] %vm59, %v58
  %s74 = scalar_lea.vmem %s1, 489
  %75 = vst.msk [vmem:[%s74] sm:$0x80] %vm59, %v58
  %v76 = vld.sshfl [vmem:[%s0] sm:$0xff pattern:$0xb3a29180]
  %77 = vrot.lane.b32.xlu0 %v76, 120
  %v78 = vpop.permute.xlu0 %77
  %vm79 = vcmask 64512
  %s80 = scalar_lea.vmem %s1, 1
  %81 = vst.msk [vmem:[%s80] ss:$16 sm:$0x3] %vm79, %v78
  %s82 = scalar_lea.vmem %s1, 33
  %83 = vst.msk [vmem:[%s82] ss:$16 sm:$0xc] %vm79, %v78
  %s84 = scalar_lea.vmem %s1, 65
  %85 = vst.msk [vmem:[%s84] ss:$16 sm:$0x30] %vm79, %v78
  %s86 = scalar_lea.vmem %s1, 97
  %87 = vst.msk [vmem:[%s86] ss:$16 sm:$0xc0] %vm79, %v78
  %s88 = scalar_lea.vmem %s0, 4
  %v89 = vld.sshfl [vmem:[%s88] sm:$0xff pattern:$0xb3a29180]
  %90 = vrot.lane.b32.xlu0 %v89, 120
  %v91 = vpop.permute.xlu0 %90
  %vm92 = vcmask 64512
  %s93 = scalar_lea.vmem %s1, 257
  %94 = vst.msk [vmem:[%s93] ss:$16 sm:$0x3] %vm92, %v91
  %s95 = scalar_lea.vmem %s1, 289
  %96 = vst.msk [vmem:[%s95] ss:$16 sm:$0xc] %vm92, %v91
  %s97 = scalar_lea.vmem %s1, 321
  %98 = vst.msk [vmem:[%s97] ss:$16 sm:$0x30] %vm92, %v91
  %s99 = scalar_lea.vmem %s1, 353
  %100 = vst.msk [vmem:[%s99] ss:$16 sm:$0xc0] %vm92, %v91
  %s101 = scalar_lea.vmem %s0, 16
  %v102 = vld.sshfl [vmem:[%s101] sm:$0xff pattern:$0xb3a29180]
  %103 = vrot.lane.b32.xlu0 %v102, 120
  %v104 = vpop.permute.xlu0 %103
  %vm105 = vcmask 64512
  %s106 = scalar_lea.vmem %s1, 33
  %107 = vst.msk [vmem:[%s106] ss:$16 sm:$0x3] %vm105, %v104
  %s108 = scalar_lea.vmem %s1, 65
  %109 = vst.msk [vmem:[%s108] ss:$16 sm:$0xc] %vm105, %v104
  %s110 = scalar_lea.vmem %s1, 97
  %111 = vst.msk [vmem:[%s110] ss:$16 sm:$0x30] %vm105, %v104
  %s112 = scalar_lea.vmem %s1, 129
  %113 = vst.msk [vmem:[%s112] ss:$16 sm:$0xc0] %vm105, %v104
  %s114 = scalar_lea.vmem %s0, 20
  %v115 = vld.sshfl [vmem:[%s114] sm:$0xff pattern:$0xb3a29180]
  %116 = vrot.lane.b32.xlu0 %v115, 120
  %v117 = vpop.permute.xlu0 %116
  %vm118 = vcmask 64512
  %s119 = scalar_lea.vmem %s1, 289
  %120 = vst.msk [vmem:[%s119] ss:$16 sm:$0x3] %vm118, %v117
  %s121 = scalar_lea.vmem %s1, 321
  %122 = vst.msk [vmem:[%s121] ss:$16 sm:$0xc] %vm118, %v117
  %s123 = scalar_lea.vmem %s1, 353
  %124 = vst.msk [vmem:[%s123] ss:$16 sm:$0x30] %vm118, %v117
  %s125 = scalar_lea.vmem %s1, 385
  %126 = vst.msk [vmem:[%s125] ss:$16 sm:$0xc0] %vm118, %v117
  %v127 = vld.sshfl [vmem:[%s0] sm:$0xff pattern:$0xb3a29180]
  %128 = vrot.lane.b32.xlu0 %v127, 112
  %v129 = vpop.permute.xlu0 %128
  %vm130 = vcmask 64512
  %s131 = scalar_lea.vmem %s1, 2
  %132 = vst.msk [vmem:[%s131] ss:$16 sm:$0x3] %vm130, %v129
  %s133 = scalar_lea.vmem %s1, 34
  %134 = vst.msk [vmem:[%s133] ss:$16 sm:$0xc] %vm130, %v129
  %s135 = scalar_lea.vmem %s1, 66
  %136 = vst.msk [vmem:[%s135] ss:$16 sm:$0x30] %vm130, %v129
  %s137 = scalar_lea.vmem %s1, 98
  %138 = vst.msk [vmem:[%s137] ss:$16 sm:$0xc0] %vm130, %v129
  %s139 = scalar_lea.vmem %s0, 4
  %v140 = vld.sshfl [vmem:[%s139] sm:$0xff pattern:$0xb3a29180]
  %141 = vrot.lane.b32.xlu0 %v140, 112
  %v142 = vpop.permute.xlu0 %141
  %vm143 = vcmask 64512
  %s144 = scalar_lea.vmem %s1, 258
  %145 = vst.msk [vmem:[%s144] ss:$16 sm:$0x3] %vm143, %v142
  %s146 = scalar_lea.vmem %s1, 290
  %147 = vst.msk [vmem:[%s146] ss:$16 sm:$0xc] %vm143, %v142
  %s148 = scalar_lea.vmem %s1, 322
  %149 = vst.msk [vmem:[%s148] ss:$16 sm:$0x30] %vm143, %v142
  %s150 = scalar_lea.vmem %s1, 354
  %151 = vst.msk [vmem:[%s150] ss:$16 sm:$0xc0] %vm143, %v142
  %s152 = scalar_lea.vmem %s0, 16
  %v153 = vld.sshfl [vmem:[%s152] sm:$0xff pattern:$0xb3a29180]
  %154 = vrot.lane.b32.xlu0 %v153, 112
  %v155 = vpop.permute.xlu0 %154
  %vm156 = vcmask 64512
  %s157 = scalar_lea.vmem %s1, 34
  %158 = vst.msk [vmem:[%s157] ss:$16 sm:$0x3] %vm156, %v155
  %s159 = scalar_lea.vmem %s1, 66
  %160 = vst.msk [vmem:[%s159] ss:$16 sm:$0xc] %vm156, %v155
  %s161 = scalar_lea.vmem %s1, 98
  %162 = vst.msk [vmem:[%s161] ss:$16 sm:$0x30] %vm156, %v155
  %s163 = scalar_lea.vmem %s1, 130
  %164 = vst.msk [vmem:[%s163] ss:$16 sm:$0xc0] %vm156, %v155
  %s165 = scalar_lea.vmem %s0, 20
  %v166 = vld.sshfl [vmem:[%s165] sm:$0xff pattern:$0xb3a29180]
  %167 = vrot.lane.b32.xlu0 %v166, 112
  %v168 = vpop.permute.xlu0 %167
  %vm169 = vcmask 64512
  %s170 = scalar_lea.vmem %s1, 290
  %171 = vst.msk [vmem:[%s170] ss:$16 sm:$0x3] %vm169, %v168
  %s172 = scalar_lea.vmem %s1, 322
  %173 = vst.msk [vmem:[%s172] ss:$16 sm:$0xc] %vm169, %v168
  %s174 = scalar_lea.vmem %s1, 354
  %175 = vst.msk [vmem:[%s174] ss:$16 sm:$0x30] %vm169, %v168
  %s176 = scalar_lea.vmem %s1, 386
  %177 = vst.msk [vmem:[%s176] ss:$16 sm:$0xc0] %vm169, %v168
  %v178 = vld.sshfl [vmem:[%s0] sm:$0xff pattern:$0xb3a29180]
  %179 = vrot.lane.b32.xlu0 %v178, 104
  %v180 = vpop.permute.xlu0 %179
  %vm181 = vcmask 64512
  %s182 = scalar_lea.vmem %s1, 3
  %183 = vst.msk [vmem:[%s182] ss:$16 sm:$0x3] %vm181, %v180
  %s184 = scalar_lea.vmem %s1, 35
  %185 = vst.msk [vmem:[%s184] ss:$16 sm:$0xc] %vm181, %v180
  %s186 = scalar_lea.vmem %s1, 67
  %187 = vst.msk [vmem:[%s186] ss:$16 sm:$0x30] %vm181, %v180
  %s188 = scalar_lea.vmem %s1, 99
  %189 = vst.msk [vmem:[%s188] ss:$16 sm:$0xc0] %vm181, %v180
  %s190 = scalar_lea.vmem %s0, 4
  %v191 = vld.sshfl [vmem:[%s190] sm:$0xff pattern:$0xb3a29180]
  %192 = vrot.lane.b32.xlu0 %v191, 104
  %v193 = vpop.permute.xlu0 %192
  %vm194 = vcmask 64512
  %s195 = scalar_lea.vmem %s1, 259
  %196 = vst.msk [vmem:[%s195] ss:$16 sm:$0x3] %vm194, %v193
  %s197 = scalar_lea.vmem %s1, 291
  %198 = vst.msk [vmem:[%s197] ss:$16 sm:$0xc] %vm194, %v193
  %s199 = scalar_lea.vmem %s1, 323
  %200 = vst.msk [vmem:[%s199] ss:$16 sm:$0x30] %vm194, %v193
  %s201 = scalar_lea.vmem %s1, 355
  %202 = vst.msk [vmem:[%s201] ss:$16 sm:$0xc0] %vm194, %v193
  %s203 = scalar_lea.vmem %s0, 16
  %v204 = vld.sshfl [vmem:[%s203] sm:$0xff pattern:$0xb3a29180]
  %205 = vrot.lane.b32.xlu0 %v204, 104
  %v206 = vpop.permute.xlu0 %205
  %vm207 = vcmask 64512
  %s208 = scalar_lea.vmem %s1, 35
  %209 = vst.msk [vmem:[%s208] ss:$16 sm:$0x3] %vm207, %v206
  %s210 = scalar_lea.vmem %s1, 67
  %211 = vst.msk [vmem:[%s210] ss:$16 sm:$0xc] %vm207, %v206
  %s212 = scalar_lea.vmem %s1, 99
  %213 = vst.msk [vmem:[%s212] ss:$16 sm:$0x30] %vm207, %v206
  %s214 = scalar_lea.vmem %s1, 131
  %215 = vst.msk [vmem:[%s214] ss:$16 sm:$0xc0] %vm207, %v206
  %s216 = scalar_lea.vmem %s0, 20
  %v217 = vld.sshfl [vmem:[%s216] sm:$0xff pattern:$0xb3a29180]
  %218 = vrot.lane.b32.xlu0 %v217, 104
  %v219 = vpop.permute.xlu0 %218
  %vm220 = vcmask 64512
  %s221 = scalar_lea.vmem %s1, 291
  %222 = vst.msk [vmem:[%s221] ss:$16 sm:$0x3] %vm220, %v219
  %s223 = scalar_lea.vmem %s1, 323
  %224 = vst.msk [vmem:[%s223] ss:$16 sm:$0xc] %vm220, %v219
  %s225 = scalar_lea.vmem %s1, 355
  %226 = vst.msk [vmem:[%s225] ss:$16 sm:$0x30] %vm220, %v219
  %s227 = scalar_lea.vmem %s1, 387
  %228 = vst.msk [vmem:[%s227] ss:$16 sm:$0xc0] %vm220, %v219
  %v229 = vld.sshfl [vmem:[%s0] sm:$0xff pattern:$0xb3a29180]
  %230 = vrot.lane.b32.xlu0 %v229, 96
  %v231 = vpop.permute.xlu0 %230
  %vm232 = vcmask 64512
  %s233 = scalar_lea.vmem %s1, 4
  %234 = vst.msk [vmem:[%s233] ss:$16 sm:$0x3] %vm232, %v231
  %s235 = scalar_lea.vmem %s1, 36
  %236 = vst.msk [vmem:[%s235] ss:$16 sm:$0xc] %vm232, %v231
  %s237 = scalar_lea.vmem %s1, 68
  %238 = vst.msk [vmem:[%s237] ss:$16 sm:$0x30] %vm232, %v231
  %s239 = scalar_lea.vmem %s1, 100
  %240 = vst.msk [vmem:[%s239] ss:$16 sm:$0xc0] %vm232, %v231
  %s241 = scalar_lea.vmem %s0, 4
  %v242 = vld.sshfl [vmem:[%s241] sm:$0xff pattern:$0xb3a29180]
  %243 = vrot.lane.b32.xlu0 %v242, 96
  %v244 = vpop.permute.xlu0 %243
  %vm245 = vcmask 64512
  %s246 = scalar_lea.vmem %s1, 260
  %247 = vst.msk [vmem:[%s246] ss:$16 sm:$0x3] %vm245, %v244
  %s248 = scalar_lea.vmem %s1, 292
  %249 = vst.msk [vmem:[%s248] ss:$16 sm:$0xc] %vm245, %v244
  %s250 = scalar_lea.vmem %s1, 324
  %251 = vst.msk [vmem:[%s250] ss:$16 sm:$0x30] %vm245, %v244
  %s252 = scalar_lea.vmem %s1, 356
  %253 = vst.msk [vmem:[%s252] ss:$16 sm:$0xc0] %vm245, %v244
  %s254 = scalar_lea.vmem %s0, 16
  %v255 = vld.sshfl [vmem:[%s254] sm:$0xff pattern:$0xb3a29180]
  %256 = vrot.lane.b32.xlu0 %v255, 96
  %v257 = vpop.permute.xlu0 %256
  %vm258 = vcmask 64512
  %s259 = scalar_lea.vmem %s1, 36
  %260 = vst.msk [vmem:[%s259] ss:$16 sm:$0x3] %vm258, %v257
  %s261 = scalar_lea.vmem %s1, 68
  %262 = vst.msk [vmem:[%s261] ss:$16 sm:$0xc] %vm258, %v257
  %s263 = scalar_lea.vmem %s1, 100
  %264 = vst.msk [vmem:[%s263] ss:$16 sm:$0x30] %vm258, %v257
  %s265 = scalar_lea.vmem %s1, 132
  %266 = vst.msk [vmem:[%s265] ss:$16 sm:$0xc0] %vm258, %v257
  %s267 = scalar_lea.vmem %s0, 20
  %v268 = vld.sshfl [vmem:[%s267] sm:$0xff pattern:$0xb3a29180]
  %269 = vrot.lane.b32.xlu0 %v268, 96
  %v270 = vpop.permute.xlu0 %269
  %vm271 = vcmask 64512
  %s272 = scalar_lea.vmem %s1, 292
  %273 = vst.msk [vmem:[%s272] ss:$16 sm:$0x3] %vm271, %v270
  %s274 = scalar_lea.vmem %s1, 324
  %275 = vst.msk [vmem:[%s274] ss:$16 sm:$0xc] %vm271, %v270
  %s276 = scalar_lea.vmem %s1, 356
  %277 = vst.msk [vmem:[%s276] ss:$16 sm:$0x30] %vm271, %v270
  %s278 = scalar_lea.vmem %s1, 388
  %279 = vst.msk [vmem:[%s278] ss:$16 sm:$0xc0] %vm271, %v270
  %v280 = vld.sshfl [vmem:[%s0] sm:$0xff pattern:$0xb3a29180]
  %281 = vrot.lane.b32.xlu0 %v280, 88
  %v282 = vpop.permute.xlu0 %281
  %vm283 = vcmask 64512
  %s284 = scalar_lea.vmem %s1, 5
  %285 = vst.msk [vmem:[%s284] ss:$16 sm:$0x3] %vm283, %v282
  %s286 = scalar_lea.vmem %s1, 37
  %287 = vst.msk [vmem:[%s286] ss:$16 sm:$0xc] %vm283, %v282
  %s288 = scalar_lea.vmem %s1, 69
  %289 = vst.msk [vmem:[%s288] ss:$16 sm:$0x30] %vm283, %v282
  %s290 = scalar_lea.vmem %s1, 101
  %291 = vst.msk [vmem:[%s290] ss:$16 sm:$0xc0] %vm283, %v282
  %s292 = scalar_lea.vmem %s0, 4
  %v293 = vld.sshfl [vmem:[%s292] sm:$0xff pattern:$0xb3a29180]
  %294 = vrot.lane.b32.xlu0 %v293, 88
  %v295 = vpop.permute.xlu0 %294
  %vm296 = vcmask 64512
  %s297 = scalar_lea.vmem %s1, 261
  %298 = vst.msk [vmem:[%s297] ss:$16 sm:$0x3] %vm296, %v295
  %s299 = scalar_lea.vmem %s1, 293
  %300 = vst.msk [vmem:[%s299] ss:$16 sm:$0xc] %vm296, %v295
  %s301 = scalar_lea.vmem %s1, 325
  %302 = vst.msk [vmem:[%s301] ss:$16 sm:$0x30] %vm296, %v295
  %s303 = scalar_lea.vmem %s1, 357
  %304 = vst.msk [vmem:[%s303] ss:$16 sm:$0xc0] %vm296, %v295
  %s305 = scalar_lea.vmem %s0, 16
  %v306 = vld.sshfl [vmem:[%s305] sm:$0xff pattern:$0xb3a29180]
  %307 = vrot.lane.b32.xlu0 %v306, 88
  %v308 = vpop.permute.xlu0 %307
  %vm309 = vcmask 64512
  %s310 = scalar_lea.vmem %s1, 37
  %311 = vst.msk [vmem:[%s310] ss:$16 sm:$0x3] %vm309, %v308
  %s312 = scalar_lea.vmem %s1, 69
  %313 = vst.msk [vmem:[%s312] ss:$16 sm:$0xc] %vm309, %v308
  %s314 = scalar_lea.vmem %s1, 101
  %315 = vst.msk [vmem:[%s314] ss:$16 sm:$0x30] %vm309, %v308
  %s316 = scalar_lea.vmem %s1, 133
  %317 = vst.msk [vmem:[%s316] ss:$16 sm:$0xc0] %vm309, %v308
  %s318 = scalar_lea.vmem %s0, 20
  %v319 = vld.sshfl [vmem:[%s318] sm:$0xff pattern:$0xb3a29180]
  %320 = vrot.lane.b32.xlu0 %v319, 88
  %v321 = vpop.permute.xlu0 %320
  %vm322 = vcmask 64512
  %s323 = scalar_lea.vmem %s1, 293
  %324 = vst.msk [vmem:[%s323] ss:$16 sm:$0x3] %vm322, %v321
  %s325 = scalar_lea.vmem %s1, 325
  %326 = vst.msk [vmem:[%s325] ss:$16 sm:$0xc] %vm322, %v321
  %s327 = scalar_lea.vmem %s1, 357
  %328 = vst.msk [vmem:[%s327] ss:$16 sm:$0x30] %vm322, %v321
  %s329 = scalar_lea.vmem %s1, 389
  %330 = vst.msk [vmem:[%s329] ss:$16 sm:$0xc0] %vm322, %v321
  %v331 = vld.sshfl [vmem:[%s0] sm:$0xff pattern:$0xb3a29180]
  %332 = vrot.lane.b32.xlu0 %v331, 80
  %v333 = vpop.permute.xlu0 %332
  %vm334 = vcmask 64512
  %s335 = scalar_lea.vmem %s1, 6
  %336 = vst.msk [vmem:[%s335] ss:$16 sm:$0x3] %vm334, %v333
  %s337 = scalar_lea.vmem %s1, 38
  %338 = vst.msk [vmem:[%s337] ss:$16 sm:$0xc] %vm334, %v333
  %s339 = scalar_lea.vmem %s1, 70
  %340 = vst.msk [vmem:[%s339] ss:$16 sm:$0x30] %vm334, %v333
  %s341 = scalar_lea.vmem %s1, 102
  %342 = vst.msk [vmem:[%s341] ss:$16 sm:$0xc0] %vm334, %v333
  %s343 = scalar_lea.vmem %s0, 4
  %v344 = vld.sshfl [vmem:[%s343] sm:$0xff pattern:$0xb3a29180]
  %345 = vrot.lane.b32.xlu0 %v344, 80
  %v346 = vpop.permute.xlu0 %345
  %vm347 = vcmask 64512
  %s348 = scalar_lea.vmem %s1, 262
  %349 = vst.msk [vmem:[%s348] ss:$16 sm:$0x3] %vm347, %v346
  %s350 = scalar_lea.vmem %s1, 294
  %351 = vst.msk [vmem:[%s350] ss:$16 sm:$0xc] %vm347, %v346
  %s352 = scalar_lea.vmem %s1, 326
  %353 = vst.msk [vmem:[%s352] ss:$16 sm:$0x30] %vm347, %v346
  %s354 = scalar_lea.vmem %s1, 358
  %355 = vst.msk [vmem:[%s354] ss:$16 sm:$0xc0] %vm347, %v346
  %s356 = scalar_lea.vmem %s0, 16
  %v357 = vld.sshfl [vmem:[%s356] sm:$0xff pattern:$0xb3a29180]
  %358 = vrot.lane.b32.xlu0 %v357, 80
  %v359 = vpop.permute.xlu0 %358
  %vm360 = vcmask 64512
  %s361 = scalar_lea.vmem %s1, 38
  %362 = vst.msk [vmem:[%s361] ss:$16 sm:$0x3] %vm360, %v359
  %s363 = scalar_lea.vmem %s1, 70
  %364 = vst.msk [vmem:[%s363] ss:$16 sm:$0xc] %vm360, %v359
  %s365 = scalar_lea.vmem %s1, 102
  %366 = vst.msk [vmem:[%s365] ss:$16 sm:$0x30] %vm360, %v359
  %s367 = scalar_lea.vmem %s1, 134
  %368 = vst.msk [vmem:[%s367] ss:$16 sm:$0xc0] %vm360, %v359
  %s369 = scalar_lea.vmem %s0, 20
  %v370 = vld.sshfl [vmem:[%s369] sm:$0xff pattern:$0xb3a29180]
  %371 = vrot.lane.b32.xlu0 %v370, 80
  %v372 = vpop.permute.xlu0 %371
  %vm373 = vcmask 64512
  %s374 = scalar_lea.vmem %s1, 294
  %375 = vst.msk [vmem:[%s374] ss:$16 sm:$0x3] %vm373, %v372
  %s376 = scalar_lea.vmem %s1, 326
  %377 = vst.msk [vmem:[%s376] ss:$16 sm:$0xc] %vm373, %v372
  %s378 = scalar_lea.vmem %s1, 358
  %379 = vst.msk [vmem:[%s378] ss:$16 sm:$0x30] %vm373, %v372
  %s380 = scalar_lea.vmem %s1, 390
  %381 = vst.msk [vmem:[%s380] ss:$16 sm:$0xc0] %vm373, %v372
  %v382 = vld.sshfl [vmem:[%s0] sm:$0xff pattern:$0xb3a29180]
  %383 = vrot.lane.b32.xlu0 %v382, 72
  %v384 = vpop.permute.xlu0 %383
  %vm385 = vcmask 64512
  %s386 = scalar_lea.vmem %s1, 7
  %387 = vst.msk [vmem:[%s386] ss:$16 sm:$0x3] %vm385, %v384
  %s388 = scalar_lea.vmem %s1, 39
  %389 = vst.msk [vmem:[%s388] ss:$16 sm:$0xc] %vm385, %v384
  %s390 = scalar_lea.vmem %s1, 71
  %391 = vst.msk [vmem:[%s390] ss:$16 sm:$0x30] %vm385, %v384
  %s392 = scalar_lea.vmem %s1, 103
  %393 = vst.msk [vmem:[%s392] ss:$16 sm:$0xc0] %vm385, %v384
  %s394 = scalar_lea.vmem %s0, 4
  %v395 = vld.sshfl [vmem:[%s394] sm:$0xff pattern:$0xb3a29180]
  %396 = vrot.lane.b32.xlu0 %v395, 72
  %v397 = vpop.permute.xlu0 %396
  %vm398 = vcmask 64512
  %s399 = scalar_lea.vmem %s1, 263
  %400 = vst.msk [vmem:[%s399] ss:$16 sm:$0x3] %vm398, %v397
  %s401 = scalar_lea.vmem %s1, 295
  %402 = vst.msk [vmem:[%s401] ss:$16 sm:$0xc] %vm398, %v397
  %s403 = scalar_lea.vmem %s1, 327
  %404 = vst.msk [vmem:[%s403] ss:$16 sm:$0x30] %vm398, %v397
  %s405 = scalar_lea.vmem %s1, 359
  %406 = vst.msk [vmem:[%s405] ss:$16 sm:$0xc0] %vm398, %v397
  %s407 = scalar_lea.vmem %s0, 16
  %v408 = vld.sshfl [vmem:[%s407] sm:$0xff pattern:$0xb3a29180]
  %409 = vrot.lane.b32.xlu0 %v408, 72
  %v410 = vpop.permute.xlu0 %409
  %vm411 = vcmask 64512
  %s412 = scalar_lea.vmem %s1, 39
  %413 = vst.msk [vmem:[%s412] ss:$16 sm:$0x3] %vm411, %v410
  %s414 = scalar_lea.vmem %s1, 71
  %415 = vst.msk [vmem:[%s414] ss:$16 sm:$0xc] %vm411, %v410
  %s416 = scalar_lea.vmem %s1, 103
  %417 = vst.msk [vmem:[%s416] ss:$16 sm:$0x30] %vm411, %v410
  %s418 = scalar_lea.vmem %s1, 135
  %419 = vst.msk [vmem:[%s418] ss:$16 sm:$0xc0] %vm411, %v410
  %s420 = scalar_lea.vmem %s0, 20
  %v421 = vld.sshfl [vmem:[%s420] sm:$0xff pattern:$0xb3a29180]
  %422 = vrot.lane.b32.xlu0 %v421, 72
  %v423 = vpop.permute.xlu0 %422
  %vm424 = vcmask 64512
  %s425 = scalar_lea.vmem %s1, 295
  %426 = vst.msk [vmem:[%s425] ss:$16 sm:$0x3] %vm424, %v423
  %s427 = scalar_lea.vmem %s1, 327
  %428 = vst.msk [vmem:[%s427] ss:$16 sm:$0xc] %vm424, %v423
  %s429 = scalar_lea.vmem %s1, 359
  %430 = vst.msk [vmem:[%s429] ss:$16 sm:$0x30] %vm424, %v423
  %s431 = scalar_lea.vmem %s1, 391
  %432 = vst.msk [vmem:[%s431] ss:$16 sm:$0xc0] %vm424, %v423
  %v433 = vld.sshfl [vmem:[%s0] sm:$0xff pattern:$0xb3a29180]
  %434 = vrot.lane.b32.xlu0 %v433, 64
  %v435 = vpop.permute.xlu0 %434
  %vm436 = vcmask 64512
  %s437 = scalar_lea.vmem %s1, 8
  %438 = vst.msk [vmem:[%s437] ss:$16 sm:$0x3] %vm436, %v435
  %s439 = scalar_lea.vmem %s1, 40
  %440 = vst.msk [vmem:[%s439] ss:$16 sm:$0xc] %vm436, %v435
  %s441 = scalar_lea.vmem %s1, 72
  %442 = vst.msk [vmem:[%s441] ss:$16 sm:$0x30] %vm436, %v435
  %s443 = scalar_lea.vmem %s1, 104
  %444 = vst.msk [vmem:[%s443] ss:$16 sm:$0xc0] %vm436, %v435
  %s445 = scalar_lea.vmem %s0, 4
  %v446 = vld.sshfl [vmem:[%s445] sm:$0xff pattern:$0xb3a29180]
  %447 = vrot.lane.b32.xlu0 %v446, 64
  %v448 = vpop.permute.xlu0 %447
  %vm449 = vcmask 64512
  %s450 = scalar_lea.vmem %s1, 264
  %451 = vst.msk [vmem:[%s450] ss:$16 sm:$0x3] %vm449, %v448
  %s452 = scalar_lea.vmem %s1, 296
  %453 = vst.msk [vmem:[%s452] ss:$16 sm:$0xc] %vm449, %v448
  %s454 = scalar_lea.vmem %s1, 328
  %455 = vst.msk [vmem:[%s454] ss:$16 sm:$0x30] %vm449, %v448
  %s456 = scalar_lea.vmem %s1, 360
  %457 = vst.msk [vmem:[%s456] ss:$16 sm:$0xc0] %vm449, %v448
  %s458 = scalar_lea.vmem %s0, 16
  %v459 = vld.sshfl [vmem:[%s458] sm:$0xff pattern:$0xb3a29180]
  %460 = vrot.lane.b32.xlu0 %v459, 64
  %v461 = vpop.permute.xlu0 %460
  %vm462 = vcmask 64512
  %s463 = scalar_lea.vmem %s1, 40
  %464 = vst.msk [vmem:[%s463] ss:$16 sm:$0x3] %vm462, %v461
  %s465 = scalar_lea.vmem %s1, 72
  %466 = vst.msk [vmem:[%s465] ss:$16 sm:$0xc] %vm462, %v461
  %s467 = scalar_lea.vmem %s1, 104
  %468 = vst.msk [vmem:[%s467] ss:$16 sm:$0x30] %vm462, %v461
  %s469 = scalar_lea.vmem %s1, 136
  %470 = vst.msk [vmem:[%s469] ss:$16 sm:$0xc0] %vm462, %v461
  %s471 = scalar_lea.vmem %s0, 20
  %v472 = vld.sshfl [vmem:[%s471] sm:$0xff pattern:$0xb3a29180]
  %473 = vrot.lane.b32.xlu0 %v472, 64
  %v474 = vpop.permute.xlu0 %473
  %vm475 = vcmask 64512
  %s476 = scalar_lea.vmem %s1, 296
  %477 = vst.msk [vmem:[%s476] ss:$16 sm:$0x3] %vm475, %v474
  %s478 = scalar_lea.vmem %s1, 328
  %479 = vst.msk [vmem:[%s478] ss:$16 sm:$0xc] %vm475, %v474
  %s480 = scalar_lea.vmem %s1, 360
  %481 = vst.msk [vmem:[%s480] ss:$16 sm:$0x30] %vm475, %v474
  %s482 = scalar_lea.vmem %s1, 392
  %483 = vst.msk [vmem:[%s482] ss:$16 sm:$0xc0] %vm475, %v474
  %v484 = vld.sshfl [vmem:[%s0] sm:$0xff pattern:$0xb3a29180]
  %485 = vrot.lane.b32.xlu0 %v484, 56
  %v486 = vpop.permute.xlu0 %485
  %vm487 = vcmask 64512
  %s488 = scalar_lea.vmem %s1, 9
  %489 = vst.msk [vmem:[%s488] ss:$16 sm:$0x3] %vm487, %v486
  %s490 = scalar_lea.vmem %s1, 41
  %491 = vst.msk [vmem:[%s490] ss:$16 sm:$0xc] %vm487, %v486
  %s492 = scalar_lea.vmem %s1, 73
  %493 = vst.msk [vmem:[%s492] ss:$16 sm:$0x30] %vm487, %v486
  %s494 = scalar_lea.vmem %s1, 105
  %495 = vst.msk [vmem:[%s494] ss:$16 sm:$0xc0] %vm487, %v486
  %s496 = scalar_lea.vmem %s0, 4
  %v497 = vld.sshfl [vmem:[%s496] sm:$0xff pattern:$0xb3a29180]
  %498 = vrot.lane.b32.xlu0 %v497, 56
  %v499 = vpop.permute.xlu0 %498
  %vm500 = vcmask 64512
  %s501 = scalar_lea.vmem %s1, 265
  %502 = vst.msk [vmem:[%s501] ss:$16 sm:$0x3] %vm500, %v499
  %s503 = scalar_lea.vmem %s1, 297
  %504 = vst.msk [vmem:[%s503] ss:$16 sm:$0xc] %vm500, %v499
  %s505 = scalar_lea.vmem %s1, 329
  %506 = vst.msk [vmem:[%s505] ss:$16 sm:$0x30] %vm500, %v499
  %s507 = scalar_lea.vmem %s1, 361
  %508 = vst.msk [vmem:[%s507] ss:$16 sm:$0xc0] %vm500, %v499
  %s509 = scalar_lea.vmem %s0, 16
  %v510 = vld.sshfl [vmem:[%s509] sm:$0xff pattern:$0xb3a29180]
  %511 = vrot.lane.b32.xlu0 %v510, 56
  %v512 = vpop.permute.xlu0 %511
  %vm513 = vcmask 64512
  %s514 = scalar_lea.vmem %s1, 41
  %515 = vst.msk [vmem:[%s514] ss:$16 sm:$0x3] %vm513, %v512
  %s516 = scalar_lea.vmem %s1, 73
  %517 = vst.msk [vmem:[%s516] ss:$16 sm:$0xc] %vm513, %v512
  %s518 = scalar_lea.vmem %s1, 105
  %519 = vst.msk [vmem:[%s518] ss:$16 sm:$0x30] %vm513, %v512
  %s520 = scalar_lea.vmem %s1, 137
  %521 = vst.msk [vmem:[%s520] ss:$16 sm:$0xc0] %vm513, %v512
  %s522 = scalar_lea.vmem %s0, 20
  %v523 = vld.sshfl [vmem:[%s522] sm:$0xff pattern:$0xb3a29180]
  %524 = vrot.lane.b32.xlu0 %v523, 56
  %v525 = vpop.permute.xlu0 %524
  %vm526 = vcmask 64512
  %s527 = scalar_lea.vmem %s1, 297
  %528 = vst.msk [vmem:[%s527] ss:$16 sm:$0x3] %vm526, %v525
  %s529 = scalar_lea.vmem %s1, 329
  %530 = vst.msk [vmem:[%s529] ss:$16 sm:$0xc] %vm526, %v525
  %s531 = scalar_lea.vmem %s1, 361
  %532 = vst.msk [vmem:[%s531] ss:$16 sm:$0x30] %vm526, %v525
  %s533 = scalar_lea.vmem %s1, 393
  %534 = vst.msk [vmem:[%s533] ss:$16 sm:$0xc0] %vm526, %v525
  %v535 = vld.sshfl [vmem:[%s0] sm:$0xff pattern:$0xb3a29180]
  %536 = vrot.lane.b32.xlu0 %v535, 48
  %v537 = vpop.permute.xlu0 %536
  %vm538 = vcmask 64512
  %s539 = scalar_lea.vmem %s1, 10
  %540 = vst.msk [vmem:[%s539] ss:$16 sm:$0x3] %vm538, %v537
  %s541 = scalar_lea.vmem %s1, 42
  %542 = vst.msk [vmem:[%s541] ss:$16 sm:$0xc] %vm538, %v537
  %s543 = scalar_lea.vmem %s1, 74
  %544 = vst.msk [vmem:[%s543] ss:$16 sm:$0x30] %vm538, %v537
  %s545 = scalar_lea.vmem %s1, 106
  %546 = vst.msk [vmem:[%s545] ss:$16 sm:$0xc0] %vm538, %v537
  %s547 = scalar_lea.vmem %s0, 4
  %v548 = vld.sshfl [vmem:[%s547] sm:$0xff pattern:$0xb3a29180]
  %549 = vrot.lane.b32.xlu0 %v548, 48
  %v550 = vpop.permute.xlu0 %549
  %vm551 = vcmask 64512
  %s552 = scalar_lea.vmem %s1, 266
  %553 = vst.msk [vmem:[%s552] ss:$16 sm:$0x3] %vm551, %v550
  %s554 = scalar_lea.vmem %s1, 298
  %555 = vst.msk [vmem:[%s554] ss:$16 sm:$0xc] %vm551, %v550
  %s556 = scalar_lea.vmem %s1, 330
  %557 = vst.msk [vmem:[%s556] ss:$16 sm:$0x30] %vm551, %v550
  %s558 = scalar_lea.vmem %s1, 362
  %559 = vst.msk [vmem:[%s558] ss:$16 sm:$0xc0] %vm551, %v550
  %s560 = scalar_lea.vmem %s0, 16
  %v561 = vld.sshfl [vmem:[%s560] sm:$0xff pattern:$0xb3a29180]
  %562 = vrot.lane.b32.xlu0 %v561, 48
  %v563 = vpop.permute.xlu0 %562
  %vm564 = vcmask 64512
  %s565 = scalar_lea.vmem %s1, 42
  %566 = vst.msk [vmem:[%s565] ss:$16 sm:$0x3] %vm564, %v563
  %s567 = scalar_lea.vmem %s1, 74
  %568 = vst.msk [vmem:[%s567] ss:$16 sm:$0xc] %vm564, %v563
  %s569 = scalar_lea.vmem %s1, 106
  %570 = vst.msk [vmem:[%s569] ss:$16 sm:$0x30] %vm564, %v563
  %s571 = scalar_lea.vmem %s1, 138
  %572 = vst.msk [vmem:[%s571] ss:$16 sm:$0xc0] %vm564, %v563
  %s573 = scalar_lea.vmem %s0, 20
  %v574 = vld.sshfl [vmem:[%s573] sm:$0xff pattern:$0xb3a29180]
  %575 = vrot.lane.b32.xlu0 %v574, 48
  %v576 = vpop.permute.xlu0 %575
  %vm577 = vcmask 64512
  %s578 = scalar_lea.vmem %s1, 298
  %579 = vst.msk [vmem:[%s578] ss:$16 sm:$0x3] %vm577, %v576
  %s580 = scalar_lea.vmem %s1, 330
  %581 = vst.msk [vmem:[%s580] ss:$16 sm:$0xc] %vm577, %v576
  %s582 = scalar_lea.vmem %s1, 362
  %583 = vst.msk [vmem:[%s582] ss:$16 sm:$0x30] %vm577, %v576
  %s584 = scalar_lea.vmem %s1, 394
  %585 = vst.msk [vmem:[%s584] ss:$16 sm:$0xc0] %vm577, %v576
  %v586 = vld.sshfl [vmem:[%s0] sm:$0xff pattern:$0xb3a29180]
  %587 = vrot.lane.b32.xlu0 %v586, 40
  %v588 = vpop.permute.xlu0 %587
  %vm589 = vcmask 64512
  %s590 = scalar_lea.vmem %s1, 11
  %591 = vst.msk [vmem:[%s590] ss:$16 sm:$0x3] %vm589, %v588
  %s592 = scalar_lea.vmem %s1, 43
  %593 = vst.msk [vmem:[%s592] ss:$16 sm:$0xc] %vm589, %v588
  %s594 = scalar_lea.vmem %s1, 75
  %595 = vst.msk [vmem:[%s594] ss:$16 sm:$0x30] %vm589, %v588
  %s596 = scalar_lea.vmem %s1, 107
  %597 = vst.msk [vmem:[%s596] ss:$16 sm:$0xc0] %vm589, %v588
  %s598 = scalar_lea.vmem %s0, 4
  %v599 = vld.sshfl [vmem:[%s598] sm:$0xff pattern:$0xb3a29180]
  %600 = vrot.lane.b32.xlu0 %v599, 40
  %v601 = vpop.permute.xlu0 %600
  %vm602 = vcmask 64512
  %s603 = scalar_lea.vmem %s1, 267
  %604 = vst.msk [vmem:[%s603] ss:$16 sm:$0x3] %vm602, %v601
  %s605 = scalar_lea.vmem %s1, 299
  %606 = vst.msk [vmem:[%s605] ss:$16 sm:$0xc] %vm602, %v601
  %s607 = scalar_lea.vmem %s1, 331
  %608 = vst.msk [vmem:[%s607] ss:$16 sm:$0x30] %vm602, %v601
  %s609 = scalar_lea.vmem %s1, 363
  %610 = vst.msk [vmem:[%s609] ss:$16 sm:$0xc0] %vm602, %v601
  %s611 = scalar_lea.vmem %s0, 16
  %v612 = vld.sshfl [vmem:[%s611] sm:$0xff pattern:$0xb3a29180]
  %613 = vrot.lane.b32.xlu0 %v612, 40
  %v614 = vpop.permute.xlu0 %613
  %vm615 = vcmask 64512
  %s616 = scalar_lea.vmem %s1, 43
  %617 = vst.msk [vmem:[%s616] ss:$16 sm:$0x3] %vm615, %v614
  %s618 = scalar_lea.vmem %s1, 75
  %619 = vst.msk [vmem:[%s618] ss:$16 sm:$0xc] %vm615, %v614
  %s620 = scalar_lea.vmem %s1, 107
  %621 = vst.msk [vmem:[%s620] ss:$16 sm:$0x30] %vm615, %v614
  %s622 = scalar_lea.vmem %s1, 139
  %623 = vst.msk [vmem:[%s622] ss:$16 sm:$0xc0] %vm615, %v614
  %s624 = scalar_lea.vmem %s0, 20
  %v625 = vld.sshfl [vmem:[%s624] sm:$0xff pattern:$0xb3a29180]
  %626 = vrot.lane.b32.xlu0 %v625, 40
  %v627 = vpop.permute.xlu0 %626
  %vm628 = vcmask 64512
  %s629 = scalar_lea.vmem %s1, 299
  %630 = vst.msk [vmem:[%s629] ss:$16 sm:$0x3] %vm628, %v627
  %s631 = scalar_lea.vmem %s1, 331
  %632 = vst.msk [vmem:[%s631] ss:$16 sm:$0xc] %vm628, %v627
  %s633 = scalar_lea.vmem %s1, 363
  %634 = vst.msk [vmem:[%s633] ss:$16 sm:$0x30] %vm628, %v627
  %s635 = scalar_lea.vmem %s1, 395
  %636 = vst.msk [vmem:[%s635] ss:$16 sm:$0xc0] %vm628, %v627
  %v637 = vld.sshfl [vmem:[%s0] sm:$0xff pattern:$0xb3a29180]
  %638 = vrot.lane.b32.xlu0 %v637, 32
  %v639 = vpop.permute.xlu0 %638
  %vm640 = vcmask 64512
  %s641 = scalar_lea.vmem %s1, 12
  %642 = vst.msk [vmem:[%s641] ss:$16 sm:$0x3] %vm640, %v639
  %s643 = scalar_lea.vmem %s1, 44
  %644 = vst.msk [vmem:[%s643] ss:$16 sm:$0xc] %vm640, %v639
  %s645 = scalar_lea.vmem %s1, 76
  %646 = vst.msk [vmem:[%s645] ss:$16 sm:$0x30] %vm640, %v639
  %s647 = scalar_lea.vmem %s1, 108
  %648 = vst.msk [vmem:[%s647] ss:$16 sm:$0xc0] %vm640, %v639
  %s649 = scalar_lea.vmem %s0, 4
  %v650 = vld.sshfl [vmem:[%s649] sm:$0xff pattern:$0xb3a29180]
  %651 = vrot.lane.b32.xlu0 %v650, 32
  %v652 = vpop.permute.xlu0 %651
  %vm653 = vcmask 64512
  %s654 = scalar_lea.vmem %s1, 268
  %655 = vst.msk [vmem:[%s654] ss:$16 sm:$0x3] %vm653, %v652
  %s656 = scalar_lea.vmem %s1, 300
  %657 = vst.msk [vmem:[%s656] ss:$16 sm:$0xc] %vm653, %v652
  %s658 = scalar_lea.vmem %s1, 332
  %659 = vst.msk [vmem:[%s658] ss:$16 sm:$0x30] %vm653, %v652
  %s660 = scalar_lea.vmem %s1, 364
  %661 = vst.msk [vmem:[%s660] ss:$16 sm:$0xc0] %vm653, %v652
  %s662 = scalar_lea.vmem %s0, 16
  %v663 = vld.sshfl [vmem:[%s662] sm:$0xff pattern:$0xb3a29180]
  %664 = vrot.lane.b32.xlu0 %v663, 32
  %v665 = vpop.permute.xlu0 %664
  %vm666 = vcmask 64512
  %s667 = scalar_lea.vmem %s1, 44
  %668 = vst.msk [vmem:[%s667] ss:$16 sm:$0x3] %vm666, %v665
  %s669 = scalar_lea.vmem %s1, 76
  %670 = vst.msk [vmem:[%s669] ss:$16 sm:$0xc] %vm666, %v665
  %s671 = scalar_lea.vmem %s1, 108
  %672 = vst.msk [vmem:[%s671] ss:$16 sm:$0x30] %vm666, %v665
  %s673 = scalar_lea.vmem %s1, 140
  %674 = vst.msk [vmem:[%s673] ss:$16 sm:$0xc0] %vm666, %v665
  %s675 = scalar_lea.vmem %s0, 20
  %v676 = vld.sshfl [vmem:[%s675] sm:$0xff pattern:$0xb3a29180]
  %677 = vrot.lane.b32.xlu0 %v676, 32
  %v678 = vpop.permute.xlu0 %677
  %vm679 = vcmask 64512
  %s680 = scalar_lea.vmem %s1, 300
  %681 = vst.msk [vmem:[%s680] ss:$16 sm:$0x3] %vm679, %v678
  %s682 = scalar_lea.vmem %s1, 332
  %683 = vst.msk [vmem:[%s682] ss:$16 sm:$0xc] %vm679, %v678
  %s684 = scalar_lea.vmem %s1, 364
  %685 = vst.msk [vmem:[%s684] ss:$16 sm:$0x30] %vm679, %v678
  %s686 = scalar_lea.vmem %s1, 396
  %687 = vst.msk [vmem:[%s686] ss:$16 sm:$0xc0] %vm679, %v678
  %v688 = vld.sshfl [vmem:[%s0] sm:$0xff pattern:$0xb3a29180]
  %689 = vrot.lane.b32.xlu0 %v688, 24
  %v690 = vpop.permute.xlu0 %689
  %vm691 = vcmask 64512
  %s692 = scalar_lea.vmem %s1, 13
  %693 = vst.msk [vmem:[%s692] ss:$16 sm:$0x3] %vm691, %v690
  %s694 = scalar_lea.vmem %s1, 45
  %695 = vst.msk [vmem:[%s694] ss:$16 sm:$0xc] %vm691, %v690
  %s696 = scalar_lea.vmem %s1, 77
  %697 = vst.msk [vmem:[%s696] ss:$16 sm:$0x30] %vm691, %v690
  %s698 = scalar_lea.vmem %s1, 109
  %699 = vst.msk [vmem:[%s698] ss:$16 sm:$0xc0] %vm691, %v690
  %s700 = scalar_lea.vmem %s0, 4
  %v701 = vld.sshfl [vmem:[%s700] sm:$0xff pattern:$0xb3a29180]
  %702 = vrot.lane.b32.xlu0 %v701, 24
  %v703 = vpop.permute.xlu0 %702
  %vm704 = vcmask 64512
  %s705 = scalar_lea.vmem %s1, 269
  %706 = vst.msk [vmem:[%s705] ss:$16 sm:$0x3] %vm704, %v703
  %s707 = scalar_lea.vmem %s1, 301
  %708 = vst.msk [vmem:[%s707] ss:$16 sm:$0xc] %vm704, %v703
  %s709 = scalar_lea.vmem %s1, 333
  %710 = vst.msk [vmem:[%s709] ss:$16 sm:$0x30] %vm704, %v703
  %s711 = scalar_lea.vmem %s1, 365
  %712 = vst.msk [vmem:[%s711] ss:$16 sm:$0xc0] %vm704, %v703
  %s713 = scalar_lea.vmem %s0, 16
  %v714 = vld.sshfl [vmem:[%s713] sm:$0xff pattern:$0xb3a29180]
  %715 = vrot.lane.b32.xlu0 %v714, 24
  %v716 = vpop.permute.xlu0 %715
  %vm717 = vcmask 64512
  %s718 = scalar_lea.vmem %s1, 45
  %719 = vst.msk [vmem:[%s718] ss:$16 sm:$0x3] %vm717, %v716
  %s720 = scalar_lea.vmem %s1, 77
  %721 = vst.msk [vmem:[%s720] ss:$16 sm:$0xc] %vm717, %v716
  %s722 = scalar_lea.vmem %s1, 109
  %723 = vst.msk [vmem:[%s722] ss:$16 sm:$0x30] %vm717, %v716
  %s724 = scalar_lea.vmem %s1, 141
  %725 = vst.msk [vmem:[%s724] ss:$16 sm:$0xc0] %vm717, %v716
  %s726 = scalar_lea.vmem %s0, 20
  %v727 = vld.sshfl [vmem:[%s726] sm:$0xff pattern:$0xb3a29180]
  %728 = vrot.lane.b32.xlu0 %v727, 24
  %v729 = vpop.permute.xlu0 %728
  %vm730 = vcmask 64512
  %s731 = scalar_lea.vmem %s1, 301
  %732 = vst.msk [vmem:[%s731] ss:$16 sm:$0x3] %vm730, %v729
  %s733 = scalar_lea.vmem %s1, 333
  %734 = vst.msk [vmem:[%s733] ss:$16 sm:$0xc] %vm730, %v729
  %s735 = scalar_lea.vmem %s1, 365
  %736 = vst.msk [vmem:[%s735] ss:$16 sm:$0x30] %vm730, %v729
  %s737 = scalar_lea.vmem %s1, 397
  %738 = vst.msk [vmem:[%s737] ss:$16 sm:$0xc0] %vm730, %v729
  %v739 = vld.sshfl [vmem:[%s0] sm:$0xff pattern:$0xb3a29180]
  %740 = vrot.lane.b32.xlu0 %v739, 16
  %v741 = vpop.permute.xlu0 %740
  %vm742 = vcmask 64512
  %s743 = scalar_lea.vmem %s1, 14
  %744 = vst.msk [vmem:[%s743] ss:$16 sm:$0x3] %vm742, %v741
  %s745 = scalar_lea.vmem %s1, 46
  %746 = vst.msk [vmem:[%s745] ss:$16 sm:$0xc] %vm742, %v741
  %s747 = scalar_lea.vmem %s1, 78
  %748 = vst.msk [vmem:[%s747] ss:$16 sm:$0x30] %vm742, %v741
  %s749 = scalar_lea.vmem %s1, 110
  %750 = vst.msk [vmem:[%s749] ss:$16 sm:$0xc0] %vm742, %v741
  %s751 = scalar_lea.vmem %s0, 4
  %v752 = vld.sshfl [vmem:[%s751] sm:$0xff pattern:$0xb3a29180]
  %753 = vrot.lane.b32.xlu0 %v752, 16
  %v754 = vpop.permute.xlu0 %753
  %vm755 = vcmask 64512
  %s756 = scalar_lea.vmem %s1, 270
  %757 = vst.msk [vmem:[%s756] ss:$16 sm:$0x3] %vm755, %v754
  %s758 = scalar_lea.vmem %s1, 302
  %759 = vst.msk [vmem:[%s758] ss:$16 sm:$0xc] %vm755, %v754
  %s760 = scalar_lea.vmem %s1, 334
  %761 = vst.msk [vmem:[%s760] ss:$16 sm:$0x30] %vm755, %v754
  %s762 = scalar_lea.vmem %s1, 366
  %763 = vst.msk [vmem:[%s762] ss:$16 sm:$0xc0] %vm755, %v754
  %s764 = scalar_lea.vmem %s0, 16
  %v765 = vld.sshfl [vmem:[%s764] sm:$0xff pattern:$0xb3a29180]
  %766 = vrot.lane.b32.xlu0 %v765, 16
  %v767 = vpop.permute.xlu0 %766
  %vm768 = vcmask 64512
  %s769 = scalar_lea.vmem %s1, 46
  %770 = vst.msk [vmem:[%s769] ss:$16 sm:$0x3] %vm768, %v767
  %s771 = scalar_lea.vmem %s1, 78
  %772 = vst.msk [vmem:[%s771] ss:$16 sm:$0xc] %vm768, %v767
  %s773 = scalar_lea.vmem %s1, 110
  %774 = vst.msk [vmem:[%s773] ss:$16 sm:$0x30] %vm768, %v767
  %s775 = scalar_lea.vmem %s1, 142
  %776 = vst.msk [vmem:[%s775] ss:$16 sm:$0xc0] %vm768, %v767
  %s777 = scalar_lea.vmem %s0, 20
  %v778 = vld.sshfl [vmem:[%s777] sm:$0xff pattern:$0xb3a29180]
  %779 = vrot.lane.b32.xlu0 %v778, 16
  %v780 = vpop.permute.xlu0 %779
  %vm781 = vcmask 64512
  %s782 = scalar_lea.vmem %s1, 302
  %783 = vst.msk [vmem:[%s782] ss:$16 sm:$0x3] %vm781, %v780
  %s784 = scalar_lea.vmem %s1, 334
  %785 = vst.msk [vmem:[%s784] ss:$16 sm:$0xc] %vm781, %v780
  %s786 = scalar_lea.vmem %s1, 366
  %787 = vst.msk [vmem:[%s786] ss:$16 sm:$0x30] %vm781, %v780
  %s788 = scalar_lea.vmem %s1, 398
  %789 = vst.msk [vmem:[%s788] ss:$16 sm:$0xc0] %vm781, %v780
  %v790 = vld.sshfl [vmem:[%s0] sm:$0xff pattern:$0xb3a29180]
  %791 = vrot.lane.b32.xlu0 %v790, 8
  %v792 = vpop.permute.xlu0 %791
  %vm793 = vcmask 64512
  %s794 = scalar_lea.vmem %s1, 15
  %795 = vst.msk [vmem:[%s794] ss:$16 sm:$0x3] %vm793, %v792
  %s796 = scalar_lea.vmem %s1, 47
  %797 = vst.msk [vmem:[%s796] ss:$16 sm:$0xc] %vm793, %v792
  %s798 = scalar_lea.vmem %s1, 79
  %799 = vst.msk [vmem:[%s798] ss:$16 sm:$0x30] %vm793, %v792
  %s800 = scalar_lea.vmem %s1, 111
  %801 = vst.msk [vmem:[%s800] ss:$16 sm:$0xc0] %vm793, %v792
  %s802 = scalar_lea.vmem %s0, 4
  %v803 = vld.sshfl [vmem:[%s802] sm:$0xff pattern:$0xb3a29180]
  %804 = vrot.lane.b32.xlu0 %v803, 8
  %v805 = vpop.permute.xlu0 %804
  %vm806 = vcmask 64512
  %s807 = scalar_lea.vmem %s1, 271
  %808 = vst.msk [vmem:[%s807] ss:$16 sm:$0x3] %vm806, %v805
  %s809 = scalar_lea.vmem %s1, 303
  %810 = vst.msk [vmem:[%s809] ss:$16 sm:$0xc] %vm806, %v805
  %s811 = scalar_lea.vmem %s1, 335
  %812 = vst.msk [vmem:[%s811] ss:$16 sm:$0x30] %vm806, %v805
  %s813 = scalar_lea.vmem %s1, 367
  %814 = vst.msk [vmem:[%s813] ss:$16 sm:$0xc0] %vm806, %v805
  %s815 = scalar_lea.vmem %s0, 16
  %v816 = vld.sshfl [vmem:[%s815] sm:$0xff pattern:$0xb3a29180]
  %817 = vrot.lane.b32.xlu0 %v816, 8
  %v818 = vpop.permute.xlu0 %817
  %vm819 = vcmask 64512
  %s820 = scalar_lea.vmem %s1, 47
  %821 = vst.msk [vmem:[%s820] ss:$16 sm:$0x3] %vm819, %v818
  %s822 = scalar_lea.vmem %s1, 79
  %823 = vst.msk [vmem:[%s822] ss:$16 sm:$0xc] %vm819, %v818
  %s824 = scalar_lea.vmem %s1, 111
  %825 = vst.msk [vmem:[%s824] ss:$16 sm:$0x30] %vm819, %v818
  %s826 = scalar_lea.vmem %s1, 143
  %827 = vst.msk [vmem:[%s826] ss:$16 sm:$0xc0] %vm819, %v818
  %s828 = scalar_lea.vmem %s0, 20
  %v829 = vld.sshfl [vmem:[%s828] sm:$0xff pattern:$0xb3a29180]
  %830 = vrot.lane.b32.xlu0 %v829, 8
  %v831 = vpop.permute.xlu0 %830
  %vm832 = vcmask 64512
  %s833 = scalar_lea.vmem %s1, 303
  %834 = vst.msk [vmem:[%s833] ss:$16 sm:$0x3] %vm832, %v831
  %s835 = scalar_lea.vmem %s1, 335
  %836 = vst.msk [vmem:[%s835] ss:$16 sm:$0xc] %vm832, %v831
  %s837 = scalar_lea.vmem %s1, 367
  %838 = vst.msk [vmem:[%s837] ss:$16 sm:$0x30] %vm832, %v831
  %s839 = scalar_lea.vmem %s1, 399
  %840 = vst.msk [vmem:[%s839] ss:$16 sm:$0xc0] %vm832, %v831

// kernel: conv_unit_transpose.3
$region0: #{conv_unit_transpose.3}
  #allocation0 [shape = 'u32[]', space=smem, size = 0x4, offset = 0x4, fixed_abs, tag = 'smem constant byte address 0x4 - core index']
  #allocation1 [shape = 'u32[72,128]{1,0:T(1,128)}', space=vmem, size = 0x9000, scoped, tag = 'internal scratch']
  %s0 = inlined_call_operand.vmem [shape: f32[32,512], index: 0, kind: input, shape index: {}, may-alias: {0,3}]
  %s1 = inlined_call_operand.vmem [shape: f32[1,512], index: 1, kind: input, shape index: {}]
  %s2 = inlined_call_operand.vmem [shape: f32[1,512], index: 2, kind: input, shape index: {}]
  %s3 = inlined_call_operand.vmem [shape: f32[32,512], index: 3, kind: output, shape index: {}, may-alias: {0,3}]
  %s4 = sld [smem:[#allocation0]]
  $region22: #{conv_unit_transpose.3} parent=0
    _
  %s6 = ssub.s32 1, %s4
  %s7 = scalar_select 0, %s6, %s4
  // Predicated region
  $region2: #{conv_unit_transpose.3} parent=0 // pred_check
    _
  $region3: #{conv_unit_transpose.3} parent=0 // pred_check_branch
    %9 = sbr.rel (0) target = $region5
  $region4: #{conv_unit_transpose.3} parent=0 // pred_region
    _
  $region5: #{conv_unit_transpose.3} parent=0 // pred_fallthru
    _
  // Predicated region
  $region6: #{conv_unit_transpose.3} parent=0 // pred_check
    _
  $region7: #{conv_unit_transpose.3} parent=0 // pred_check_branch
    %11 = sbr.rel (0) target = $region9
  $region8: #{conv_unit_transpose.3} parent=0 // pred_region
    _
  $region9: #{conv_unit_transpose.3} parent=0 // pred_fallthru
    _
  // Predicated region
  $region10: #{conv_unit_transpose.3} parent=0 // pred_check
    _
  $region11: #{conv_unit_transpose.3} parent=0 // pred_check_branch
    %13 = sbr.rel (0) target = $region13
  $region12: #{conv_unit_transpose.3} parent=0 // pred_region
    _
  $region13: #{conv_unit_transpose.3} parent=0 // pred_fallthru
    _
  %v14 = vld [vmem:[%s0] sm:$0xff]
  %v15 = vld [vmem:[%s0 + $0x8] sm:$0xff]
  %v16 = vld [vmem:[%s0 + $0x10] sm:$0xff]
  %v17 = vld [vmem:[%s0 + $0x18] sm:$0xff]
  %v18 = vld [vmem:[%s0 + $0x20] sm:$0xff]
  %v19 = vld [vmem:[%s0 + $0x28] sm:$0xff]
  %v20 = vld [vmem:[%s0 + $0x30] sm:$0xff]
  %v21 = vld [vmem:[%s0 + $0x38] sm:$0xff]
  %v22 = vld [vmem:[%s0 + $0x40] sm:$0xff]
  %v23 = vld [vmem:[%s0 + $0x48] sm:$0xff]
  %v24 = vld [vmem:[%s0 + $0x50] sm:$0xff]
  %v25 = vld [vmem:[%s0 + $0x58] sm:$0xff]
  %v26 = vld [vmem:[%s0 + $0x60] sm:$0xff]
  %v27 = vld [vmem:[%s0 + $0x68] sm:$0xff]
  %v28 = vld [vmem:[%s0 + $0x70] sm:$0xff]
  %v29 = vld [vmem:[%s0 + $0x78] sm:$0xff]
  %v30 = vld [vmem:[%s1] sm:$0xf]
  %v32 = vperm.slane %v30, 0
  %v33 = vperm.slane %v30, 1
  %v34 = vperm.slane %v30, 2
  %v35 = vperm.slane %v30, 3
  %v40 = vmul.f32 %v14, %v32
  %v41 = vmul.f32 %v15, %v33
  %v42 = vmul.f32 %v16, %v34
  %v43 = vmul.f32 %v17, %v35
  %v44 = vmul.f32 %v18, %v32
  %v45 = vmul.f32 %v19, %v33
  %v46 = vmul.f32 %v20, %v34
  %v47 = vmul.f32 %v21, %v35
  %v48 = vmul.f32 %v22, %v32
  %v49 = vmul.f32 %v23, %v33
  %v50 = vmul.f32 %v24, %v34
  %v51 = vmul.f32 %v25, %v35
  %v52 = vmul.f32 %v26, %v32
  %v53 = vmul.f32 %v27, %v33
  %v54 = vmul.f32 %v28, %v34
  %v55 = vmul.f32 %v29, %v35
  %v56 = vld [vmem:[%s2] sm:$0xf]
  %v58 = vperm.slane %v56, 0
  %v59 = vperm.slane %v56, 1
  %v60 = vperm.slane %v56, 2
  %v61 = vperm.slane %v56, 3
  %v66 = vadd.f32 %v40, %v58
  %v67 = vadd.f32 %v41, %v59
  %v68 = vadd.f32 %v42, %v60
  %v69 = vadd.f32 %v43, %v61
  %v70 = vadd.f32 %v44, %v58
  %v71 = vadd.f32 %v45, %v59
  %v72 = vadd.f32 %v46, %v60
  %v73 = vadd.f32 %v47, %v61
  %v74 = vadd.f32 %v48, %v58
  %v75 = vadd.f32 %v49, %v59
  %v76 = vadd.f32 %v50, %v60
  %v77 = vadd.f32 %v51, %v61
  %v78 = vadd.f32 %v52, %v58
  %v79 = vadd.f32 %v53, %v59
  %v80 = vadd.f32 %v54, %v60
  %v81 = vadd.f32 %v55, %v61
  %vm82 = vcmp.ge.f32.partialorder %v66, 0.0
  %vm83 = vcmp.ge.f32.partialorder %v67, 0.0
  %vm84 = vcmp.ge.f32.partialorder %v68, 0.0
  %vm85 = vcmp.ge.f32.partialorder %v69, 0.0
  %vm86 = vcmp.ge.f32.partialorder %v70, 0.0
  %vm87 = vcmp.ge.f32.partialorder %v71, 0.0
  %vm88 = vcmp.ge.f32.partialorder %v72, 0.0
  %vm89 = vcmp.ge.f32.partialorder %v73, 0.0
  %vm90 = vcmp.ge.f32.partialorder %v74, 0.0
  %vm91 = vcmp.ge.f32.partialorder %v75, 0.0
  %vm92 = vcmp.ge.f32.partialorder %v76, 0.0
  %vm93 = vcmp.ge.f32.partialorder %v77, 0.0
  %vm94 = vcmp.ge.f32.partialorder %v78, 0.0
  %vm95 = vcmp.ge.f32.partialorder %v79, 0.0
  %vm96 = vcmp.ge.f32.partialorder %v80, 0.0
  %vm97 = vcmp.ge.f32.partialorder %v81, 0.0
  %v98 = vmul.f32 %v66, 0.2
  %v99 = vmul.f32 %v67, 0.2
  %v100 = vmul.f32 %v68, 0.2
  %v101 = vmul.f32 %v69, 0.2
  %v102 = vmul.f32 %v70, 0.2
  %v103 = vmul.f32 %v71, 0.2
  %v104 = vmul.f32 %v72, 0.2
  %v105 = vmul.f32 %v73, 0.2
  %v106 = vmul.f32 %v74, 0.2
  %v107 = vmul.f32 %v75, 0.2
  %v108 = vmul.f32 %v76, 0.2
  %v109 = vmul.f32 %v77, 0.2
  %v110 = vmul.f32 %v78, 0.2
  %v111 = vmul.f32 %v79, 0.2
  %v112 = vmul.f32 %v80, 0.2
  %v113 = vmul.f32 %v81, 0.2
  %v114 = vsel %vm82, %v66, %v98
  %v115 = vsel %vm83, %v67, %v99
  %v116 = vsel %vm84, %v68, %v100
  %v117 = vsel %vm85, %v69, %v101
  %v118 = vsel %vm86, %v70, %v102
  %v119 = vsel %vm87, %v71, %v103
  %v120 = vsel %vm88, %v72, %v104
  %v121 = vsel %vm89, %v73, %v105
  %v122 = vsel %vm90, %v74, %v106
  %v123 = vsel %vm91, %v75, %v107
  %v124 = vsel %vm92, %v76, %v108
  %v125 = vsel %vm93, %v77, %v109
  %v126 = vsel %vm94, %v78, %v110
  %v127 = vsel %vm95, %v79, %v111
  %v128 = vsel %vm96, %v80, %v112
  %v129 = vsel %vm97, %v81, %v113
  %130 = vst [vmem:[%s3] sm:$0xff] %v114
  %131 = vst [vmem:[%s3 + $0x8] sm:$0xff] %v115
  %132 = vst [vmem:[%s3 + $0x10] sm:$0xff] %v116
  %133 = vst [vmem:[%s3 + $0x18] sm:$0xff] %v117
  %134 = vst [vmem:[%s3 + $0x20] sm:$0xff] %v118
  %135 = vst [vmem:[%s3 + $0x28] sm:$0xff] %v119
  %136 = vst [vmem:[%s3 + $0x30] sm:$0xff] %v120
  %137 = vst [vmem:[%s3 + $0x38] sm:$0xff] %v121
  %138 = vst [vmem:[%s3 + $0x40] sm:$0xff] %v122
  %139 = vst [vmem:[%s3 + $0x48] sm:$0xff] %v123
  %140 = vst [vmem:[%s3 + $0x50] sm:$0xff] %v124
  %141 = vst [vmem:[%s3 + $0x58] sm:$0xff] %v125
  %142 = vst [vmem:[%s3 + $0x60] sm:$0xff] %v126
  %143 = vst [vmem:[%s3 + $0x68] sm:$0xff] %v127
  %144 = vst [vmem:[%s3 + $0x70] sm:$0xff] %v128
  %145 = vst [vmem:[%s3 + $0x78] sm:$0xff] %v129
  // Predicated region
  $region14: #{conv_unit_transpose.3} parent=0 // pred_check
    _
  $region15: #{conv_unit_transpose.3} parent=0 // pred_check_branch
    %147 = sbr.rel (0) target = $region17
  $region16: #{conv_unit_transpose.3} parent=0 // pred_region
    _
  $region17: #{conv_unit_transpose.3} parent=0 // pred_fallthru
    _
  // Predicated region
  $region18: #{conv_unit_transpose.3} parent=0 // pred_check
    _
  $region19: #{conv_unit_transpose.3} parent=0 // pred_check_branch
    %149 = sbr.rel (0) target = $region21
  $region20: #{conv_unit_transpose.3} parent=0 // pred_region
    _
  $region21: #{conv_unit_transpose.3} parent=0 // pred_fallthru
    _

// kernel: conv_unit_transpose.2
$region0: #{conv_unit_transpose.2}
  #allocation0 [shape = 'u32[]', space=smem, size = 0x4, offset = 0x4, fixed_abs, tag = 'smem constant byte address 0x4 - core index']
  #allocation1 [shape = 'u32[72,128]{1,0:T(1,128)}', space=vmem, size = 0x9000, scoped, tag = 'internal scratch']
  %s0 = inlined_call_operand.vmem [shape: f32[4,512,16], index: 0, kind: input, shape index: {}]
  %s1 = inlined_call_operand.vmem [shape: f32[4,16,8], index: 1, kind: input, shape index: {}]
  %s2 = inlined_call_operand.vmem [shape: f32[1,8], index: 2, kind: input, shape index: {}]
  %s3 = inlined_call_operand.vmem [shape: f32[4,512,8], index: 3, kind: output, shape index: {0}]
  %s4 = inlined_call_operand.vmem [shape: f32[4,1,2,8], index: 4, kind: output, shape index: {1}]
  %5 = xla_tuple %s3, %s4
  %s6 = sld [smem:[#allocation0]]
  $region53: #{conv_unit_transpose.2} parent=0
    _
  %s8 = ssub.s32 1, %s6
  %s9 = scalar_select 0, %s8, %s6
  loop: start=0, step=1, limit=6
  $region2: #{conv_unit_transpose.2} parent=0 // loop_pre_header
    _
  $region3: #{conv_unit_transpose.2} parent=0 // loop_header
    %s11 = sphi 0, %s15
    %p12 = scmp.ge.s32.totalorder %s11, 6
    %s18 = sphi 0, %s30
    %s19 = sphi 0, %s26
    %s20 = sphi 0, %s18
    %s21 = sphi 0, %s19
    %s22 = sphi 0, %s20
    %s23 = sphi 0, %s21
    %s35 = sphi 0, %s37
    %s38 = sphi 0, %s35
    %s39 = sphi 0, %s38
    %s55 = sphi 0, %s39
    %s61 = sphi 0, %s63
    %s64 = sphi 0, %s61
    %s65 = sphi 0, %s64
    %s81 = sphi 0, %s65
    %s85 = sphi 0, %s85
    %s87 = sphi 0, %s85
    %s88 = sphi 0, %s87
    %s102 = sphi 0, %s88
    %s110 = sphi 0, %s112
    %s113 = sphi 0, %s110
    %s114 = sphi 0, %s113
    %s130 = sphi 0, %s114
    %s138 = sphi 0, %s140
    %s141 = sphi 0, %s138
    %s142 = sphi 0, %s141
    %s158 = sphi 0, %s142
  $region4: #{conv_unit_transpose.2} parent=0 // loop_header_branch
    %14 = sbr.rel (%p12) target = $region8
  $region5: #{conv_unit_transpose.2} parent=0 // loop_body
    %s16 = ssub.s32 %s11, 1
    %s17 = ssub.s32 %s11, 2
    %s24 = sadd.s32 1, %s19
    %p25 = scmp.ge.s32.totalorder %s24, 1
    %s26 = scalar_select %p25, 0, %s24
    %s27 = sadd.s32 1, %s18
    %s28 = scalar_select %p25, %s27, %s18
    %p29 = scmp.ge.s32.totalorder %s28, 4
    %s30 = scalar_select %p29, 0, %s28
    %s31 = ssub.s32 %s18, %s30
    %s32 = ssub.s32 %s19, %s26
    %s33 = sor.u32 %s31, %s32
    %p34 = scmp.eq.s32.totalorder %s33, 0
    %s36 = sadd.s32 %s35, 1
    %s37 = scalar_select %p34, %s35, %s36
    %p40 = pneg %p34
    %p41 = scmp.eq.s32.totalorder %s11, 3
    %p42 = por %p40, %p41
    %p43 = scmp.ne.s32.totalorder %s35, %s38
    %p44 = scmp.eq.s32.totalorder %s11, 0
    %p45 = por %p43, %p44
    %p46 = scmp.ne.s32.totalorder %s35, %s38
    %p47 = scmp.eq.s32.totalorder %s16, 3
    %p48 = por %p46, %p47
    %p49 = scmp.ne.s32.totalorder %s38, %s39
    %p50 = scmp.eq.s32.totalorder %s16, 0
    %p51 = por %p49, %p50
    %p52 = scmp.ne.s32.totalorder %s38, %s39
    %p53 = scmp.eq.s32.totalorder %s17, 3
    %p54 = por %p52, %p53
    %p56 = scmp.ne.s32.totalorder %s39, %s55
    %p57 = scmp.eq.s32.totalorder %s17, 0
    %p58 = por %p56, %p57
    %s59 = ssub.s32 %s18, %s30
    %p60 = scmp.eq.s32.totalorder %s59, 0
    %s62 = sadd.s32 %s61, 1
    %s63 = scalar_select %p60, %s61, %s62
    %p66 = pneg %p60
    %p67 = scmp.eq.s32.totalorder %s11, 3
    %p68 = por %p66, %p67
    %p69 = scmp.ne.s32.totalorder %s61, %s64
    %p70 = scmp.eq.s32.totalorder %s11, 0
    %p71 = por %p69, %p70
    %p72 = scmp.ne.s32.totalorder %s61, %s64
    %p73 = scmp.eq.s32.totalorder %s16, 3
    %p74 = por %p72, %p73
    %p75 = scmp.ne.s32.totalorder %s64, %s65
    %p76 = scmp.eq.s32.totalorder %s16, 0
    %p77 = por %p75, %p76
    %p78 = scmp.ne.s32.totalorder %s64, %s65
    %p79 = scmp.eq.s32.totalorder %s17, 3
    %p80 = por %p78, %p79
    %p82 = scmp.ne.s32.totalorder %s65, %s81
    %p83 = scmp.eq.s32.totalorder %s17, 0
    %p84 = por %p82, %p83
    %s86 = sadd.s32 %s85, 1
    %p89 = scmp.eq.s32.totalorder %s11, 3
    %p90 = scmp.ne.s32.totalorder %s85, %s87
    %p91 = scmp.eq.s32.totalorder %s11, 0
    %p92 = por %p90, %p91
    %p93 = scmp.ne.s32.totalorder %s85, %s87
    %p94 = scmp.eq.s32.totalorder %s16, 3
    %p95 = por %p93, %p94
    %p96 = scmp.ne.s32.totalorder %s87, %s88
    %p97 = scmp.eq.s32.totalorder %s16, 0
    %p98 = por %p96, %p97
    %p99 = scmp.ne.s32.totalorder %s87, %s88
    %p100 = scmp.eq.s32.totalorder %s17, 3
    %p101 = por %p99, %p100
    %p103 = scmp.ne.s32.totalorder %s88, %s102
    %p104 = scmp.eq.s32.totalorder %s17, 0
    %p105 = por %p103, %p104
    %s106 = ssub.s32 %s18, %s30
    %s107 = ssub.s32 %s19, %s26
    %s108 = sor.u32 %s106, %s107
    %p109 = scmp.eq.s32.totalorder %s108, 0
    %s111 = sadd.s32 %s110, 1
    %s112 = scalar_select %p109, %s110, %s111
    %p115 = pneg %p109
    %p116 = scmp.eq.s32.totalorder %s11, 3
    %p117 = por %p115, %p116
    %p118 = scmp.ne.s32.totalorder %s110, %s113
    %p119 = scmp.eq.s32.totalorder %s11, 0
    %p120 = por %p118, %p119
    %p121 = scmp.ne.s32.totalorder %s110, %s113
    %p122 = scmp.eq.s32.totalorder %s16, 3
    %p123 = por %p121, %p122
    %p124 = scmp.ne.s32.totalorder %s113, %s114
    %p125 = scmp.eq.s32.totalorder %s16, 0
    %p126 = por %p124, %p125
    %p127 = scmp.ne.s32.totalorder %s113, %s114
    %p128 = scmp.eq.s32.totalorder %s17, 3
    %p129 = por %p127, %p128
    %p131 = scmp.ne.s32.totalorder %s114, %s130
    %p132 = scmp.eq.s32.totalorder %s17, 0
    %p133 = por %p131, %p132
    %s134 = ssub.s32 %s18, %s30
    %s135 = ssub.s32 %s19, %s26
    %s136 = sor.u32 %s134, %s135
    %p137 = scmp.eq.s32.totalorder %s136, 0
    %s139 = sadd.s32 %s138, 1
    %s140 = scalar_select %p137, %s138, %s139
    %p143 = pneg %p137
    %p144 = scmp.eq.s32.totalorder %s11, 3
    %p145 = por %p143, %p144
    %p146 = scmp.ne.s32.totalorder %s138, %s141
    %p147 = scmp.eq.s32.totalorder %s11, 0
    %p148 = por %p146, %p147
    %p149 = scmp.ne.s32.totalorder %s138, %s141
    %p150 = scmp.eq.s32.totalorder %s16, 3
    %p151 = por %p149, %p150
    %p152 = scmp.ne.s32.totalorder %s141, %s142
    %p153 = scmp.eq.s32.totalorder %s16, 0
    %p154 = por %p152, %p153
    %p155 = scmp.ne.s32.totalorder %s141, %s142
    %p156 = scmp.eq.s32.totalorder %s17, 3
    %p157 = por %p155, %p156
    %p159 = scmp.ne.s32.totalorder %s142, %s158
    %p160 = scmp.eq.s32.totalorder %s17, 0
    %p161 = por %p159, %p160
    %p162 = scmp.le.s32.totalorder 1, %s11
    %p163 = scmp.lt.s32.totalorder %s11, 5
    %p164 = pnand %p162, %p163
    %p165 = pneg %p164
    // Predicated region
    $region9: #{conv_unit_transpose.2} parent=5 // pred_check
      _
    $region10: #{conv_unit_transpose.2} parent=5 // pred_check_branch
      %167 = sbr.rel (%p164) target = $region12
    $region11: #{conv_unit_transpose.2} parent=5 // pred_region
      %s168 = ssub.s32 %s11, 1
      // Predicated region
      $region13: #{conv_unit_transpose.2} parent=11 // pred_check
        %p169 = pneg %p98
      $region14: #{conv_unit_transpose.2} parent=11 // pred_check_branch
        %171 = sbr.rel (%p169) target = $region16
      $region15: #{conv_unit_transpose.2} parent=11 // pred_region
        _
      $region16: #{conv_unit_transpose.2} parent=11 // pred_fallthru
        _
    $region12: #{conv_unit_transpose.2} parent=5 // pred_fallthru
      _
    %p172 = scmp.lt.s32.totalorder %s11, 4
    // Predicated region
    $region17: #{conv_unit_transpose.2} parent=5 // pred_check
      %p173 = pneg %p172
    $region18: #{conv_unit_transpose.2} parent=5 // pred_check_branch
      %175 = sbr.rel (%p173) target = $region20
    $region19: #{conv_unit_transpose.2} parent=5 // pred_region
      // Predicated region
      $region21: #{conv_unit_transpose.2} parent=19 // pred_check
        %p176 = pneg %p45
      $region22: #{conv_unit_transpose.2} parent=19 // pred_check_branch
        %178 = sbr.rel (%p176) target = $region24
      $region23: #{conv_unit_transpose.2} parent=19 // pred_region
        %s179 = smul.u32 64, %s19
        %p180 = scmp.lt.s32.totalorder %s18, 3
        %s181 = scalar_select %p180, %s18, 3
        %p182 = scmp.lt.s32.totalorder %s179, 63
        %s183 = scalar_select %p182, %s179, 63
        %s184 = smul.addr %s181, 64
        %s185 = sadd.s32 %s183, %s184
        %s186 = smul.addr %s185, 8
        %s187 = scalar_lea.vmem %s0, %s186
        %s188 = smul.u32 64, %s19
      $region24: #{conv_unit_transpose.2} parent=19 // pred_fallthru
        _
      // Predicated region
      $region25: #{conv_unit_transpose.2} parent=19 // pred_check
        %p189 = pneg %p71
      $region26: #{conv_unit_transpose.2} parent=19 // pred_check_branch
        %191 = sbr.rel (%p189) target = $region28
      $region27: #{conv_unit_transpose.2} parent=19 // pred_region
        %p192 = scmp.lt.s32.totalorder %s18, 3
        %s193 = scalar_select %p192, %s18, 3
        %s194 = smul.addr %s193, 2
        %s195 = smul.addr %s194, 8
        %s196 = scalar_lea.vmem %s1, %s195
      $region28: #{conv_unit_transpose.2} parent=19 // pred_fallthru
        _
    $region20: #{conv_unit_transpose.2} parent=5 // pred_fallthru
      _
    %p197 = scmp.le.s32.totalorder 1, %s11
    %p198 = scmp.lt.s32.totalorder %s11, 5
    %p199 = pnand %p197, %p198
    %p200 = pneg %p199
    // Predicated region
    $region29: #{conv_unit_transpose.2} parent=5 // pred_check
      _
    $region30: #{conv_unit_transpose.2} parent=5 // pred_check_branch
      %202 = sbr.rel (%p199) target = $region32
    $region31: #{conv_unit_transpose.2} parent=5 // pred_region
      %s203 = ssub.s32 %s11, 1
      %s204 = smul.u32 64, %s21
      %p205 = scmp.lt.s32.totalorder %s20, 3
      %s206 = scalar_select %p205, %s20, 3
      %p207 = scmp.lt.s32.totalorder %s204, 63
      %s208 = scalar_select %p207, %s204, 63
      %s209 = smul.addr %s206, 64
      %s210 = sadd.s32 %s208, %s209
      %s211 = smul.addr %s210, 8
      %s212 = scalar_lea.vmem %s0, %s211
      %p213 = pneg %p51
      %p214 = pneg %p48
      %p215 = scmp.lt.s32.totalorder %s20, 3
      %s216 = scalar_select %p215, %s20, 3
      %s217 = smul.addr %s216, 2
      %s218 = smul.addr %s217, 8
      %s219 = scalar_lea.vmem %s1, %s218
      %p220 = pneg %p77
      %p221 = pneg %p74
      %p222 = pneg %p98
      %p223 = pneg %p95
      %p224 = pneg %p126
      %p225 = pneg %p123
      %s226 = smul.u32 64, %s21
      %p227 = scmp.lt.s32.totalorder %s20, 3
      %s228 = scalar_select %p227, %s20, 3
      %p229 = scmp.lt.s32.totalorder %s226, 63
      %s230 = scalar_select %p229, %s226, 63
      %s231 = smul.addr %s228, 64
      %s232 = sadd.s32 %s230, %s231
      %s233 = smul.addr %s232, 8
      %s234 = scalar_lea.vmem %s3, %s233
      %p235 = pneg %p154
      %p236 = pneg %p151
      %p237 = scmp.lt.s32.totalorder %s20, 3
      %s238 = scalar_select %p237, %s20, 3
      %p239 = scmp.lt.s32.totalorder %s21, 0
      %s240 = scalar_select %p239, %s21, 0
      %s241 = sadd.s32 %s240, %s238
      %s242 = smul.addr %s241, 2
      %s243 = scalar_lea.vmem %s4, %s242
      %s244 = smul.u32 64, %s21
      %p245 = scmp.lt.s32.totalorder %s20, 3
      %s246 = scalar_select %p245, %s20, 3
      %p247 = scmp.lt.s32.totalorder %s244, 63
      %s248 = scalar_select %p247, %s244, 63
      %s249 = smul.addr %s246, 64
      %s250 = sadd.s32 %s248, %s249
      %s251 = smul.addr %s250, 8
      %s252 = scalar_lea.vmem %s0, %s251
      %s253 = smul.u32 64, %s21
      %p254 = scmp.lt.s32.totalorder %s20, 3
      %s255 = scalar_select %p254, %s20, 3
      %s256 = smul.addr %s255, 2
      %s257 = smul.addr %s256, 8
      %s258 = scalar_lea.vmem %s1, %s257
      %s259 = smul.u32 64, %s21
      %p260 = scmp.lt.s32.totalorder %s20, 3
      %s261 = scalar_select %p260, %s20, 3
      %p262 = scmp.lt.s32.totalorder %s259, 63
      %s263 = scalar_select %p262, %s259, 63
      %s264 = smul.addr %s261, 64
      %s265 = sadd.s32 %s263, %s264
      %s266 = smul.addr %s265, 8
      %s267 = scalar_lea.vmem %s3, %s266
      %s268 = smul.u32 64, %s21
      %p269 = scmp.lt.s32.totalorder %s20, 3
      %s270 = scalar_select %p269, %s20, 3
      %p271 = scmp.lt.s32.totalorder %s21, 0
      %s272 = scalar_select %p271, %s21, 0
      %s273 = sadd.s32 %s272, %s270
      %s274 = smul.addr %s273, 2
      %s275 = scalar_lea.vmem %s4, %s274
      %v276 = vld [vmem:[%s252] sm:$0xff]
      %v277 = vld [vmem:[%s252 + $0x8] sm:$0xff]
      %v278 = vld [vmem:[%s252 + $0x10] sm:$0xff]
      %v279 = vld [vmem:[%s252 + $0x18] sm:$0xff]
      %v280 = vld [vmem:[%s252 + $0x20] sm:$0xff]
      %v281 = vld [vmem:[%s252 + $0x28] sm:$0xff]
      %v282 = vld [vmem:[%s252 + $0x30] sm:$0xff]
      %v283 = vld [vmem:[%s252 + $0x38] sm:$0xff]
      %v284 = vld [vmem:[%s252 + $0x40] sm:$0xff]
      %v285 = vld [vmem:[%s252 + $0x48] sm:$0xff]
      %v286 = vld [vmem:[%s252 + $0x50] sm:$0xff]
      %v287 = vld [vmem:[%s252 + $0x58] sm:$0xff]
      %v288 = vld [vmem:[%s252 + $0x60] sm:$0xff]
      %v289 = vld [vmem:[%s252 + $0x68] sm:$0xff]
      %v290 = vld [vmem:[%s252 + $0x70] sm:$0xff]
      %v291 = vld [vmem:[%s252 + $0x78] sm:$0xff]
      %v292 = vld [vmem:[%s252 + $0x80] sm:$0xff]
      %v293 = vld [vmem:[%s252 + $0x88] sm:$0xff]
      %v294 = vld [vmem:[%s252 + $0x90] sm:$0xff]
      %v295 = vld [vmem:[%s252 + $0x98] sm:$0xff]
      %v296 = vld [vmem:[%s252 + $0xa0] sm:$0xff]
      %v297 = vld [vmem:[%s252 + $0xa8] sm:$0xff]
      %v298 = vld [vmem:[%s252 + $0xb0] sm:$0xff]
      %v299 = vld [vmem:[%s252 + $0xb8] sm:$0xff]
      %v300 = vld [vmem:[%s252 + $0xc0] sm:$0xff]
      %v301 = vld [vmem:[%s252 + $0xc8] sm:$0xff]
      %v302 = vld [vmem:[%s252 + $0xd0] sm:$0xff]
      %v303 = vld [vmem:[%s252 + $0xd8] sm:$0xff]
      %v304 = vld [vmem:[%s252 + $0xe0] sm:$0xff]
      %v305 = vld [vmem:[%s252 + $0xe8] sm:$0xff]
      %v306 = vld [vmem:[%s252 + $0xf0] sm:$0xff]
      %v307 = vld [vmem:[%s252 + $0xf8] sm:$0xff]
      %v308 = vld [vmem:[%s252 + $0x100] sm:$0xff]
      %v309 = vld [vmem:[%s252 + $0x108] sm:$0xff]
      %v310 = vld [vmem:[%s252 + $0x110] sm:$0xff]
      %v311 = vld [vmem:[%s252 + $0x118] sm:$0xff]
      %v312 = vld [vmem:[%s252 + $0x120] sm:$0xff]
      %v313 = vld [vmem:[%s252 + $0x128] sm:$0xff]
      %v314 = vld [vmem:[%s252 + $0x130] sm:$0xff]
      %v315 = vld [vmem:[%s252 + $0x138] sm:$0xff]
      %v316 = vld [vmem:[%s252 + $0x140] sm:$0xff]
      %v317 = vld [vmem:[%s252 + $0x148] sm:$0xff]
      %v318 = vld [vmem:[%s252 + $0x150] sm:$0xff]
      %v319 = vld [vmem:[%s252 + $0x158] sm:$0xff]
      %v320 = vld [vmem:[%s252 + $0x160] sm:$0xff]
      %v321 = vld [vmem:[%s252 + $0x168] sm:$0xff]
      %v322 = vld [vmem:[%s252 + $0x170] sm:$0xff]
      %v323 = vld [vmem:[%s252 + $0x178] sm:$0xff]
      %v324 = vld [vmem:[%s252 + $0x180] sm:$0xff]
      %v325 = vld [vmem:[%s252 + $0x188] sm:$0xff]
      %v326 = vld [vmem:[%s252 + $0x190] sm:$0xff]
      %v327 = vld [vmem:[%s252 + $0x198] sm:$0xff]
      %v328 = vld [vmem:[%s252 + $0x1a0] sm:$0xff]
      %v329 = vld [vmem:[%s252 + $0x1a8] sm:$0xff]
      %v330 = vld [vmem:[%s252 + $0x1b0] sm:$0xff]
      %v331 = vld [vmem:[%s252 + $0x1b8] sm:$0xff]
      %v332 = vld [vmem:[%s252 + $0x1c0] sm:$0xff]
      %v333 = vld [vmem:[%s252 + $0x1c8] sm:$0xff]
      %v334 = vld [vmem:[%s252 + $0x1d0] sm:$0xff]
      %v335 = vld [vmem:[%s252 + $0x1d8] sm:$0xff]
      %v336 = vld [vmem:[%s252 + $0x1e0] sm:$0xff]
      %v337 = vld [vmem:[%s252 + $0x1e8] sm:$0xff]
      %v338 = vld [vmem:[%s252 + $0x1f0] sm:$0xff]
      %v339 = vld [vmem:[%s252 + $0x1f8] sm:$0xff]
      %v340 = vld [vmem:[%s258] sm:$0xff]
      %v341 = vld [vmem:[%s258 + $0x8] sm:$0xff]
      %vm342 = vcmask 130048
      %v344 = vsel %vm342, %v276, 0
      %v347 = vsel %vm342, %v277, 0
      %v350 = vsel %vm342, %v278, 0
      %v353 = vsel %vm342, %v279, 0
      %v356 = vsel %vm342, %v280, 0
      %v359 = vsel %vm342, %v281, 0
      %v362 = vsel %vm342, %v282, 0
      %v365 = vsel %vm342, %v283, 0
      %v368 = vsel %vm342, %v284, 0
      %v371 = vsel %vm342, %v285, 0
      %v374 = vsel %vm342, %v286, 0
      %v377 = vsel %vm342, %v287, 0
      %v380 = vsel %vm342, %v288, 0
      %v383 = vsel %vm342, %v289, 0
      %v386 = vsel %vm342, %v290, 0
      %v389 = vsel %vm342, %v291, 0
      %v392 = vsel %vm342, %v292, 0
      %v395 = vsel %vm342, %v293, 0
      %v398 = vsel %vm342, %v294, 0
      %v401 = vsel %vm342, %v295, 0
      %v404 = vsel %vm342, %v296, 0
      %v407 = vsel %vm342, %v297, 0
      %v410 = vsel %vm342, %v298, 0
      %v413 = vsel %vm342, %v299, 0
      %v416 = vsel %vm342, %v300, 0
      %v419 = vsel %vm342, %v301, 0
      %v422 = vsel %vm342, %v302, 0
      %v425 = vsel %vm342, %v303, 0
      %v428 = vsel %vm342, %v304, 0
      %v431 = vsel %vm342, %v305, 0
      %v434 = vsel %vm342, %v306, 0
      %v437 = vsel %vm342, %v307, 0
      %v440 = vsel %vm342, %v308, 0
      %v443 = vsel %vm342, %v309, 0
      %v446 = vsel %vm342, %v310, 0
      %v449 = vsel %vm342, %v311, 0
      %v452 = vsel %vm342, %v312, 0
      %v455 = vsel %vm342, %v313, 0
      %v458 = vsel %vm342, %v314, 0
      %v461 = vsel %vm342, %v315, 0
      %v464 = vsel %vm342, %v316, 0
      %v467 = vsel %vm342, %v317, 0
      %v470 = vsel %vm342, %v318, 0
      %v473 = vsel %vm342, %v319, 0
      %v476 = vsel %vm342, %v320, 0
      %v479 = vsel %vm342, %v321, 0
      %v482 = vsel %vm342, %v322, 0
      %v485 = vsel %vm342, %v323, 0
      %v488 = vsel %vm342, %v324, 0
      %v491 = vsel %vm342, %v325, 0
      %v494 = vsel %vm342, %v326, 0
      %v497 = vsel %vm342, %v327, 0
      %v500 = vsel %vm342, %v328, 0
      %v503 = vsel %vm342, %v329, 0
      %v506 = vsel %vm342, %v330, 0
      %v509 = vsel %vm342, %v331, 0
      %v512 = vsel %vm342, %v332, 0
      %v515 = vsel %vm342, %v333, 0
      %v518 = vsel %vm342, %v334, 0
      %v521 = vsel %vm342, %v335, 0
      %v524 = vsel %vm342, %v336, 0
      %v527 = vsel %vm342, %v337, 0
      %v530 = vsel %vm342, %v338, 0
      %v533 = vsel %vm342, %v339, 0
      %535 = vmatpush.msra.mxu0 0.0
      %536 = vmatpush.msra.mxu0 0.0
      %537 = vmatpush.msra.mxu0 0.0
      %538 = vmatpush.msra.mxu0 0.0
      %539 = vmatpush.msra.mxu0 0.0
      %540 = vmatpush.msra.mxu0 0.0
      %541 = vmatpush.msra.mxu0 0.0
      %542 = vmatpush.msra.mxu0 0.0
      %543 = vmatpush.msra.mxu0 0.0
      %544 = vmatpush.msra.mxu0 0.0
      %545 = vmatpush.msra.mxu0 0.0
      %546 = vmatpush.msra.mxu0 0.0
      %547 = vmatpush.msra.mxu0 0.0
      %548 = vmatpush.msra.mxu0 0.0
      %549 = vmatpush.msra.mxu0 %v341
      %550 = vmatpush.msra.mxu0 %v340
      %551 = vmatmul.f32.gmra.mxu0 %v344
      %v552 = vpop.f32.mrf.mxu0
      %v553 = vadd.f32 0.0, %v552
      %554 = vmatmul.f32.gmra.mxu0 %v347
      %v555 = vpop.f32.mrf.mxu0
      %v556 = vadd.f32 0.0, %v555
      %557 = vmatmul.f32.gmra.mxu0 %v350
      %v558 = vpop.f32.mrf.mxu0
      %v559 = vadd.f32 0.0, %v558
      %560 = vmatmul.f32.gmra.mxu0 %v353
      %v561 = vpop.f32.mrf.mxu0
      %v562 = vadd.f32 0.0, %v561
      %563 = vmatmul.f32.gmra.mxu0 %v356
      %v564 = vpop.f32.mrf.mxu0
      %v565 = vadd.f32 0.0, %v564
      %566 = vmatmul.f32.gmra.mxu0 %v359
      %v567 = vpop.f32.mrf.mxu0
      %v568 = vadd.f32 0.0, %v567
      %569 = vmatmul.f32.gmra.mxu0 %v362
      %v570 = vpop.f32.mrf.mxu0
      %v571 = vadd.f32 0.0, %v570
      %572 = vmatmul.f32.gmra.mxu0 %v365
      %v573 = vpop.f32.mrf.mxu0
      %v574 = vadd.f32 0.0, %v573
      %575 = vmatmul.f32.gmra.mxu0 %v368
      %v576 = vpop.f32.mrf.mxu0
      %v577 = vadd.f32 0.0, %v576
      %578 = vmatmul.f32.gmra.mxu0 %v371
      %v579 = vpop.f32.mrf.mxu0
      %v580 = vadd.f32 0.0, %v579
      %581 = vmatmul.f32.gmra.mxu0 %v374
      %v582 = vpop.f32.mrf.mxu0
      %v583 = vadd.f32 0.0, %v582
      %584 = vmatmul.f32.gmra.mxu0 %v377
      %v585 = vpop.f32.mrf.mxu0
      %v586 = vadd.f32 0.0, %v585
      %587 = vmatmul.f32.gmra.mxu0 %v380
      %v588 = vpop.f32.mrf.mxu0
      %v589 = vadd.f32 0.0, %v588
      %590 = vmatmul.f32.gmra.mxu0 %v383
      %v591 = vpop.f32.mrf.mxu0
      %v592 = vadd.f32 0.0, %v591
      %593 = vmatmul.f32.gmra.mxu0 %v386
      %v594 = vpop.f32.mrf.mxu0
      %v595 = vadd.f32 0.0, %v594
      %596 = vmatmul.f32.gmra.mxu0 %v389
      %v597 = vpop.f32.mrf.mxu0
      %v598 = vadd.f32 0.0, %v597
      %599 = vmatmul.f32.gmra.mxu0 %v392
      %v600 = vpop.f32.mrf.mxu0
      %v601 = vadd.f32 0.0, %v600
      %602 = vmatmul.f32.gmra.mxu0 %v395
      %v603 = vpop.f32.mrf.mxu0
      %v604 = vadd.f32 0.0, %v603
      %605 = vmatmul.f32.gmra.mxu0 %v398
      %v606 = vpop.f32.mrf.mxu0
      %v607 = vadd.f32 0.0, %v606
      %608 = vmatmul.f32.gmra.mxu0 %v401
      %v609 = vpop.f32.mrf.mxu0
      %v610 = vadd.f32 0.0, %v609
      %611 = vmatmul.f32.gmra.mxu0 %v404
      %v612 = vpop.f32.mrf.mxu0
      %v613 = vadd.f32 0.0, %v612
      %614 = vmatmul.f32.gmra.mxu0 %v407
      %v615 = vpop.f32.mrf.mxu0
      %v616 = vadd.f32 0.0, %v615
      %617 = vmatmul.f32.gmra.mxu0 %v410
      %v618 = vpop.f32.mrf.mxu0
      %v619 = vadd.f32 0.0, %v618
      %620 = vmatmul.f32.gmra.mxu0 %v413
      %v621 = vpop.f32.mrf.mxu0
      %v622 = vadd.f32 0.0, %v621
      %623 = vmatmul.f32.gmra.mxu0 %v416
      %v624 = vpop.f32.mrf.mxu0
      %v625 = vadd.f32 0.0, %v624
      %626 = vmatmul.f32.gmra.mxu0 %v419
      %v627 = vpop.f32.mrf.mxu0
      %v628 = vadd.f32 0.0, %v627
      %629 = vmatmul.f32.gmra.mxu0 %v422
      %v630 = vpop.f32.mrf.mxu0
      %v631 = vadd.f32 0.0, %v630
      %632 = vmatmul.f32.gmra.mxu0 %v425
      %v633 = vpop.f32.mrf.mxu0
      %v634 = vadd.f32 0.0, %v633
      %635 = vmatmul.f32.gmra.mxu0 %v428
      %v636 = vpop.f32.mrf.mxu0
      %v637 = vadd.f32 0.0, %v636
      %638 = vmatmul.f32.gmra.mxu0 %v431
      %v639 = vpop.f32.mrf.mxu0
      %v640 = vadd.f32 0.0, %v639
      %641 = vmatmul.f32.gmra.mxu0 %v434
      %v642 = vpop.f32.mrf.mxu0
      %v643 = vadd.f32 0.0, %v642
      %644 = vmatmul.f32.gmra.mxu0 %v437
      %v645 = vpop.f32.mrf.mxu0
      %v646 = vadd.f32 0.0, %v645
      %647 = vmatmul.f32.gmra.mxu0 %v440
      %v648 = vpop.f32.mrf.mxu0
      %v649 = vadd.f32 0.0, %v648
      %650 = vmatmul.f32.gmra.mxu0 %v443
      %v651 = vpop.f32.mrf.mxu0
      %v652 = vadd.f32 0.0, %v651
      %653 = vmatmul.f32.gmra.mxu0 %v446
      %v654 = vpop.f32.mrf.mxu0
      %v655 = vadd.f32 0.0, %v654
      %656 = vmatmul.f32.gmra.mxu0 %v449
      %v657 = vpop.f32.mrf.mxu0
      %v658 = vadd.f32 0.0, %v657
      %659 = vmatmul.f32.gmra.mxu0 %v452
      %v660 = vpop.f32.mrf.mxu0
      %v661 = vadd.f32 0.0, %v660
      %662 = vmatmul.f32.gmra.mxu0 %v455
      %v663 = vpop.f32.mrf.mxu0
      %v664 = vadd.f32 0.0, %v663
      %665 = vmatmul.f32.gmra.mxu0 %v458
      %v666 = vpop.f32.mrf.mxu0
      %v667 = vadd.f32 0.0, %v666
      %668 = vmatmul.f32.gmra.mxu0 %v461
      %v669 = vpop.f32.mrf.mxu0
      %v670 = vadd.f32 0.0, %v669
      %671 = vmatmul.f32.gmra.mxu0 %v464
      %v672 = vpop.f32.mrf.mxu0
      %v673 = vadd.f32 0.0, %v672
      %674 = vmatmul.f32.gmra.mxu0 %v467
      %v675 = vpop.f32.mrf.mxu0
      %v676 = vadd.f32 0.0, %v675
      %677 = vmatmul.f32.gmra.mxu0 %v470
      %v678 = vpop.f32.mrf.mxu0
      %v679 = vadd.f32 0.0, %v678
      %680 = vmatmul.f32.gmra.mxu0 %v473
      %v681 = vpop.f32.mrf.mxu0
      %v682 = vadd.f32 0.0, %v681
      %683 = vmatmul.f32.gmra.mxu0 %v476
      %v684 = vpop.f32.mrf.mxu0
      %v685 = vadd.f32 0.0, %v684
      %686 = vmatmul.f32.gmra.mxu0 %v479
      %v687 = vpop.f32.mrf.mxu0
      %v688 = vadd.f32 0.0, %v687
      %689 = vmatmul.f32.gmra.mxu0 %v482
      %v690 = vpop.f32.mrf.mxu0
      %v691 = vadd.f32 0.0, %v690
      %692 = vmatmul.f32.gmra.mxu0 %v485
      %v693 = vpop.f32.mrf.mxu0
      %v694 = vadd.f32 0.0, %v693
      %695 = vmatmul.f32.gmra.mxu0 %v488
      %v696 = vpop.f32.mrf.mxu0
      %v697 = vadd.f32 0.0, %v696
      %698 = vmatmul.f32.gmra.mxu0 %v491
      %v699 = vpop.f32.mrf.mxu0
      %v700 = vadd.f32 0.0, %v699
      %701 = vmatmul.f32.gmra.mxu0 %v494
      %v702 = vpop.f32.mrf.mxu0
      %v703 = vadd.f32 0.0, %v702
      %704 = vmatmul.f32.gmra.mxu0 %v497
      %v705 = vpop.f32.mrf.mxu0
      %v706 = vadd.f32 0.0, %v705
      %707 = vmatmul.f32.gmra.mxu0 %v500
      %v708 = vpop.f32.mrf.mxu0
      %v709 = vadd.f32 0.0, %v708
      %710 = vmatmul.f32.gmra.mxu0 %v503
      %v711 = vpop.f32.mrf.mxu0
      %v712 = vadd.f32 0.0, %v711
      %713 = vmatmul.f32.gmra.mxu0 %v506
      %v714 = vpop.f32.mrf.mxu0
      %v715 = vadd.f32 0.0, %v714
      %716 = vmatmul.f32.gmra.mxu0 %v509
      %v717 = vpop.f32.mrf.mxu0
      %v718 = vadd.f32 0.0, %v717
      %719 = vmatmul.f32.gmra.mxu0 %v512
      %v720 = vpop.f32.mrf.mxu0
      %v721 = vadd.f32 0.0, %v720
      %722 = vmatmul.f32.gmra.mxu0 %v515
      %v723 = vpop.f32.mrf.mxu0
      %v724 = vadd.f32 0.0, %v723
      %725 = vmatmul.f32.gmra.mxu0 %v518
      %v726 = vpop.f32.mrf.mxu0
      %v727 = vadd.f32 0.0, %v726
      %728 = vmatmul.f32.gmra.mxu0 %v521
      %v729 = vpop.f32.mrf.mxu0
      %v730 = vadd.f32 0.0, %v729
      %731 = vmatmul.f32.gmra.mxu0 %v524
      %v732 = vpop.f32.mrf.mxu0
      %v733 = vadd.f32 0.0, %v732
      %734 = vmatmul.f32.gmra.mxu0 %v527
      %v735 = vpop.f32.mrf.mxu0
      %v736 = vadd.f32 0.0, %v735
      %737 = vmatmul.f32.gmra.mxu0 %v530
      %v738 = vpop.f32.mrf.mxu0
      %v739 = vadd.f32 0.0, %v738
      %740 = vmatmul.f32.gmra.mxu0 %v533
      %v741 = vpop.f32.mrf.mxu0
      %v742 = vadd.f32 0.0, %v741
      %743 = vdwg.mxu0
      %v744 = vld [vmem:[%s2] sm:$0x1]
      %v746 = vperm.slane %v744, 0
      %v748 = vadd.f32 %v553, %v746
      %v749 = vadd.f32 %v556, %v746
      %v750 = vadd.f32 %v559, %v746
      %v751 = vadd.f32 %v562, %v746
      %v752 = vadd.f32 %v565, %v746
      %v753 = vadd.f32 %v568, %v746
      %v754 = vadd.f32 %v571, %v746
      %v755 = vadd.f32 %v574, %v746
      %v756 = vadd.f32 %v577, %v746
      %v757 = vadd.f32 %v580, %v746
      %v758 = vadd.f32 %v583, %v746
      %v759 = vadd.f32 %v586, %v746
      %v760 = vadd.f32 %v589, %v746
      %v761 = vadd.f32 %v592, %v746
      %v762 = vadd.f32 %v595, %v746
      %v763 = vadd.f32 %v598, %v746
      %v764 = vadd.f32 %v601, %v746
      %v765 = vadd.f32 %v604, %v746
      %v766 = vadd.f32 %v607, %v746
      %v767 = vadd.f32 %v610, %v746
      %v768 = vadd.f32 %v613, %v746
      %v769 = vadd.f32 %v616, %v746
      %v770 = vadd.f32 %v619, %v746
      %v771 = vadd.f32 %v622, %v746
      %v772 = vadd.f32 %v625, %v746
      %v773 = vadd.f32 %v628, %v746
      %v774 = vadd.f32 %v631, %v746
      %v775 = vadd.f32 %v634, %v746
      %v776 = vadd.f32 %v637, %v746
      %v777 = vadd.f32 %v640, %v746
      %v778 = vadd.f32 %v643, %v746
      %v779 = vadd.f32 %v646, %v746
      %v780 = vadd.f32 %v649, %v746
      %v781 = vadd.f32 %v652, %v746
      %v782 = vadd.f32 %v655, %v746
      %v783 = vadd.f32 %v658, %v746
      %v784 = vadd.f32 %v661, %v746
      %v785 = vadd.f32 %v664, %v746
      %v786 = vadd.f32 %v667, %v746
      %v787 = vadd.f32 %v670, %v746
      %v788 = vadd.f32 %v673, %v746
      %v789 = vadd.f32 %v676, %v746
      %v790 = vadd.f32 %v679, %v746
      %v791 = vadd.f32 %v682, %v746
      %v792 = vadd.f32 %v685, %v746
      %v793 = vadd.f32 %v688, %v746
      %v794 = vadd.f32 %v691, %v746
      %v795 = vadd.f32 %v694, %v746
      %v796 = vadd.f32 %v697, %v746
      %v797 = vadd.f32 %v700, %v746
      %v798 = vadd.f32 %v703, %v746
      %v799 = vadd.f32 %v706, %v746
      %v800 = vadd.f32 %v709, %v746
      %v801 = vadd.f32 %v712, %v746
      %v802 = vadd.f32 %v715, %v746
      %v803 = vadd.f32 %v718, %v746
      %v804 = vadd.f32 %v721, %v746
      %v805 = vadd.f32 %v724, %v746
      %v806 = vadd.f32 %v727, %v746
      %v807 = vadd.f32 %v730, %v746
      %v808 = vadd.f32 %v733, %v746
      %v809 = vadd.f32 %v736, %v746
      %v810 = vadd.f32 %v739, %v746
      %v811 = vadd.f32 %v742, %v746
      %vm812 = vcmask 64512
      %813 = vst.msk [vmem:[%s267] sm:$0xff] %vm812, %v748
      %814 = vst.msk [vmem:[%s267 + $0x8] sm:$0xff] %vm812, %v749
      %815 = vst.msk [vmem:[%s267 + $0x10] sm:$0xff] %vm812, %v750
      %816 = vst.msk [vmem:[%s267 + $0x18] sm:$0xff] %vm812, %v751
      %817 = vst.msk [vmem:[%s267 + $0x20] sm:$0xff] %vm812, %v752
      %818 = vst.msk [vmem:[%s267 + $0x28] sm:$0xff] %vm812, %v753
      %819 = vst.msk [vmem:[%s267 + $0x30] sm:$0xff] %vm812, %v754
      %820 = vst.msk [vmem:[%s267 + $0x38] sm:$0xff] %vm812, %v755
      %821 = vst.msk [vmem:[%s267 + $0x40] sm:$0xff] %vm812, %v756
      %822 = vst.msk [vmem:[%s267 + $0x48] sm:$0xff] %vm812, %v757
      %823 = vst.msk [vmem:[%s267 + $0x50] sm:$0xff] %vm812, %v758
      %824 = vst.msk [vmem:[%s267 + $0x58] sm:$0xff] %vm812, %v759
      %825 = vst.msk [vmem:[%s267 + $0x60] sm:$0xff] %vm812, %v760
      %826 = vst.msk [vmem:[%s267 + $0x68] sm:$0xff] %vm812, %v761
      %827 = vst.msk [vmem:[%s267 + $0x70] sm:$0xff] %vm812, %v762
      %828 = vst.msk [vmem:[%s267 + $0x78] sm:$0xff] %vm812, %v763
      %829 = vst.msk [vmem:[%s267 + $0x80] sm:$0xff] %vm812, %v764
      %830 = vst.msk [vmem:[%s267 + $0x88] sm:$0xff] %vm812, %v765
      %831 = vst.msk [vmem:[%s267 + $0x90] sm:$0xff] %vm812, %v766
      %832 = vst.msk [vmem:[%s267 + $0x98] sm:$0xff] %vm812, %v767
      %833 = vst.msk [vmem:[%s267 + $0xa0] sm:$0xff] %vm812, %v768
      %834 = vst.msk [vmem:[%s267 + $0xa8] sm:$0xff] %vm812, %v769
      %835 = vst.msk [vmem:[%s267 + $0xb0] sm:$0xff] %vm812, %v770
      %836 = vst.msk [vmem:[%s267 + $0xb8] sm:$0xff] %vm812, %v771
      %837 = vst.msk [vmem:[%s267 + $0xc0] sm:$0xff] %vm812, %v772
      %838 = vst.msk [vmem:[%s267 + $0xc8] sm:$0xff] %vm812, %v773
      %839 = vst.msk [vmem:[%s267 + $0xd0] sm:$0xff] %vm812, %v774
      %840 = vst.msk [vmem:[%s267 + $0xd8] sm:$0xff] %vm812, %v775
      %841 = vst.msk [vmem:[%s267 + $0xe0] sm:$0xff] %vm812, %v776
      %842 = vst.msk [vmem:[%s267 + $0xe8] sm:$0xff] %vm812, %v777
      %843 = vst.msk [vmem:[%s267 + $0xf0] sm:$0xff] %vm812, %v778
      %844 = vst.msk [vmem:[%s267 + $0xf8] sm:$0xff] %vm812, %v779
      %845 = vst.msk [vmem:[%s267 + $0x100] sm:$0xff] %vm812, %v780
      %846 = vst.msk [vmem:[%s267 + $0x108] sm:$0xff] %vm812, %v781
      %847 = vst.msk [vmem:[%s267 + $0x110] sm:$0xff] %vm812, %v782
      %848 = vst.msk [vmem:[%s267 + $0x118] sm:$0xff] %vm812, %v783
      %849 = vst.msk [vmem:[%s267 + $0x120] sm:$0xff] %vm812, %v784
      %850 = vst.msk [vmem:[%s267 + $0x128] sm:$0xff] %vm812, %v785
      %851 = vst.msk [vmem:[%s267 + $0x130] sm:$0xff] %vm812, %v786
      %852 = vst.msk [vmem:[%s267 + $0x138] sm:$0xff] %vm812, %v787
      %853 = vst.msk [vmem:[%s267 + $0x140] sm:$0xff] %vm812, %v788
      %854 = vst.msk [vmem:[%s267 + $0x148] sm:$0xff] %vm812, %v789
      %855 = vst.msk [vmem:[%s267 + $0x150] sm:$0xff] %vm812, %v790
      %856 = vst.msk [vmem:[%s267 + $0x158] sm:$0xff] %vm812, %v791
      %857 = vst.msk [vmem:[%s267 + $0x160] sm:$0xff] %vm812, %v792
      %858 = vst.msk [vmem:[%s267 + $0x168] sm:$0xff] %vm812, %v793
      %859 = vst.msk [vmem:[%s267 + $0x170] sm:$0xff] %vm812, %v794
      %860 = vst.msk [vmem:[%s267 + $0x178] sm:$0xff] %vm812, %v795
      %861 = vst.msk [vmem:[%s267 + $0x180] sm:$0xff] %vm812, %v796
      %862 = vst.msk [vmem:[%s267 + $0x188] sm:$0xff] %vm812, %v797
      %863 = vst.msk [vmem:[%s267 + $0x190] sm:$0xff] %vm812, %v798
      %864 = vst.msk [vmem:[%s267 + $0x198] sm:$0xff] %vm812, %v799
      %865 = vst.msk [vmem:[%s267 + $0x1a0] sm:$0xff] %vm812, %v800
      %866 = vst.msk [vmem:[%s267 + $0x1a8] sm:$0xff] %vm812, %v801
      %867 = vst.msk [vmem:[%s267 + $0x1b0] sm:$0xff] %vm812, %v802
      %868 = vst.msk [vmem:[%s267 + $0x1b8] sm:$0xff] %vm812, %v803
      %869 = vst.msk [vmem:[%s267 + $0x1c0] sm:$0xff] %vm812, %v804
      %870 = vst.msk [vmem:[%s267 + $0x1c8] sm:$0xff] %vm812, %v805
      %871 = vst.msk [vmem:[%s267 + $0x1d0] sm:$0xff] %vm812, %v806
      %872 = vst.msk [vmem:[%s267 + $0x1d8] sm:$0xff] %vm812, %v807
      %873 = vst.msk [vmem:[%s267 + $0x1e0] sm:$0xff] %vm812, %v808
      %874 = vst.msk [vmem:[%s267 + $0x1e8] sm:$0xff] %vm812, %v809
      %875 = vst.msk [vmem:[%s267 + $0x1f0] sm:$0xff] %vm812, %v810
      %876 = vst.msk [vmem:[%s267 + $0x1f8] sm:$0xff] %vm812, %v811
      %v877 = vsel %vm812, %v553, 0.0
      %v878 = vsel %vm812, %v556, 0.0
      %v879 = vadd.f32 %v877, %v878
      %v880 = vsel %vm812, %v559, 0.0
      %v881 = vadd.f32 %v879, %v880
      %v882 = vsel %vm812, %v562, 0.0
      %v883 = vadd.f32 %v881, %v882
      %v884 = vsel %vm812, %v565, 0.0
      %v885 = vadd.f32 %v883, %v884
      %v886 = vsel %vm812, %v568, 0.0
      %v887 = vadd.f32 %v885, %v886
      %v888 = vsel %vm812, %v571, 0.0
      %v889 = vadd.f32 %v887, %v888
      %v890 = vsel %vm812, %v574, 0.0
      %v891 = vadd.f32 %v889, %v890
      %v892 = vsel %vm812, %v577, 0.0
      %v893 = vadd.f32 %v891, %v892
      %v894 = vsel %vm812, %v580, 0.0
      %v895 = vadd.f32 %v893, %v894
      %v896 = vsel %vm812, %v583, 0.0
      %v897 = vadd.f32 %v895, %v896
      %v898 = vsel %vm812, %v586, 0.0
      %v899 = vadd.f32 %v897, %v898
      %v900 = vsel %vm812, %v589, 0.0
      %v901 = vadd.f32 %v899, %v900
      %v902 = vsel %vm812, %v592, 0.0
      %v903 = vadd.f32 %v901, %v902
      %v904 = vsel %vm812, %v595, 0.0
      %v905 = vadd.f32 %v903, %v904
      %v906 = vsel %vm812, %v598, 0.0
      %v907 = vadd.f32 %v905, %v906
      %v908 = vsel %vm812, %v601, 0.0
      %v909 = vadd.f32 %v907, %v908
      %v910 = vsel %vm812, %v604, 0.0
      %v911 = vadd.f32 %v909, %v910
      %v912 = vsel %vm812, %v607, 0.0
      %v913 = vadd.f32 %v911, %v912
      %v914 = vsel %vm812, %v610, 0.0
      %v915 = vadd.f32 %v913, %v914
      %v916 = vsel %vm812, %v613, 0.0
      %v917 = vadd.f32 %v915, %v916
      %v918 = vsel %vm812, %v616, 0.0
      %v919 = vadd.f32 %v917, %v918
      %v920 = vsel %vm812, %v619, 0.0
      %v921 = vadd.f32 %v919, %v920
      %v922 = vsel %vm812, %v622, 0.0
      %v923 = vadd.f32 %v921, %v922
      %v924 = vsel %vm812, %v625, 0.0
      %v925 = vadd.f32 %v923, %v924
      %v926 = vsel %vm812, %v628, 0.0
      %v927 = vadd.f32 %v925, %v926
      %v928 = vsel %vm812, %v631, 0.0
      %v929 = vadd.f32 %v927, %v928
      %v930 = vsel %vm812, %v634, 0.0
      %v931 = vadd.f32 %v929, %v930
      %v932 = vsel %vm812, %v637, 0.0
      %v933 = vadd.f32 %v931, %v932
      %v934 = vsel %vm812, %v640, 0.0
      %v935 = vadd.f32 %v933, %v934
      %v936 = vsel %vm812, %v643, 0.0
      %v937 = vadd.f32 %v935, %v936
      %v938 = vsel %vm812, %v646, 0.0
      %v939 = vadd.f32 %v937, %v938
      %v940 = vsel %vm812, %v649, 0.0
      %v941 = vadd.f32 %v939, %v940
      %v942 = vsel %vm812, %v652, 0.0
      %v943 = vadd.f32 %v941, %v942
      %v944 = vsel %vm812, %v655, 0.0
      %v945 = vadd.f32 %v943, %v944
      %v946 = vsel %vm812, %v658, 0.0
      %v947 = vadd.f32 %v945, %v946
      %v948 = vsel %vm812, %v661, 0.0
      %v949 = vadd.f32 %v947, %v948
      %v950 = vsel %vm812, %v664, 0.0
      %v951 = vadd.f32 %v949, %v950
      %v952 = vsel %vm812, %v667, 0.0
      %v953 = vadd.f32 %v951, %v952
      %v954 = vsel %vm812, %v670, 0.0
      %v955 = vadd.f32 %v953, %v954
      %v956 = vsel %vm812, %v673, 0.0
      %v957 = vadd.f32 %v955, %v956
      %v958 = vsel %vm812, %v676, 0.0
      %v959 = vadd.f32 %v957, %v958
      %v960 = vsel %vm812, %v679, 0.0
      %v961 = vadd.f32 %v959, %v960
      %v962 = vsel %vm812, %v682, 0.0
      %v963 = vadd.f32 %v961, %v962
      %v964 = vsel %vm812, %v685, 0.0
      %v965 = vadd.f32 %v963, %v964
      %v966 = vsel %vm812, %v688, 0.0
      %v967 = vadd.f32 %v965, %v966
      %v968 = vsel %vm812, %v691, 0.0
      %v969 = vadd.f32 %v967, %v968
      %v970 = vsel %vm812, %v694, 0.0
      %v971 = vadd.f32 %v969, %v970
      %v972 = vsel %vm812, %v697, 0.0
      %v973 = vadd.f32 %v971, %v972
      %v974 = vsel %vm812, %v700, 0.0
      %v975 = vadd.f32 %v973, %v974
      %v976 = vsel %vm812, %v703, 0.0
      %v977 = vadd.f32 %v975, %v976
      %v978 = vsel %vm812, %v706, 0.0
      %v979 = vadd.f32 %v977, %v978
      %v980 = vsel %vm812, %v709, 0.0
      %v981 = vadd.f32 %v979, %v980
      %v982 = vsel %vm812, %v712, 0.0
      %v983 = vadd.f32 %v981, %v982
      %v984 = vsel %vm812, %v715, 0.0
      %v985 = vadd.f32 %v983, %v984
      %v986 = vsel %vm812, %v718, 0.0
      %v987 = vadd.f32 %v985, %v986
      %v988 = vsel %vm812, %v721, 0.0
      %v989 = vadd.f32 %v987, %v988
      %v990 = vsel %vm812, %v724, 0.0
      %v991 = vadd.f32 %v989, %v990
      %v992 = vsel %vm812, %v727, 0.0
      %v993 = vadd.f32 %v991, %v992
      %v994 = vsel %vm812, %v730, 0.0
      %v995 = vadd.f32 %v993, %v994
      %v996 = vsel %vm812, %v733, 0.0
      %v997 = vadd.f32 %v995, %v996
      %v998 = vsel %vm812, %v736, 0.0
      %v999 = vadd.f32 %v997, %v998
      %v1000 = vsel %vm812, %v739, 0.0
      %v1001 = vadd.f32 %v999, %v1000
      %v1002 = vsel %vm812, %v742, 0.0
      %v1003 = vadd.f32 %v1001, %v1002
      %v1004 = vrot.slane %v1003, 4
      %v1005 = vadd.f32 %v1003, %v1004
      %v1006 = vrot.slane %v1005, 2
      %v1007 = vadd.f32 %v1005, %v1006
      %v1008 = vrot.slane %v1007, 1
      %v1009 = vadd.f32 %v1007, %v1008
      %v1010 = vmul.f32 %v553, %v553
      %v1011 = vmul.f32 %v556, %v556
      %v1012 = vmul.f32 %v559, %v559
      %v1013 = vmul.f32 %v562, %v562
      %v1014 = vmul.f32 %v565, %v565
      %v1015 = vmul.f32 %v568, %v568
      %v1016 = vmul.f32 %v571, %v571
      %v1017 = vmul.f32 %v574, %v574
      %v1018 = vmul.f32 %v577, %v577
      %v1019 = vmul.f32 %v580, %v580
      %v1020 = vmul.f32 %v583, %v583
      %v1021 = vmul.f32 %v586, %v586
      %v1022 = vmul.f32 %v589, %v589
      %v1023 = vmul.f32 %v592, %v592
      %v1024 = vmul.f32 %v595, %v595
      %v1025 = vmul.f32 %v598, %v598
      %v1026 = vmul.f32 %v601, %v601
      %v1027 = vmul.f32 %v604, %v604
      %v1028 = vmul.f32 %v607, %v607
      %v1029 = vmul.f32 %v610, %v610
      %v1030 = vmul.f32 %v613, %v613
      %v1031 = vmul.f32 %v616, %v616
      %v1032 = vmul.f32 %v619, %v619
      %v1033 = vmul.f32 %v622, %v622
      %v1034 = vmul.f32 %v625, %v625
      %v1035 = vmul.f32 %v628, %v628
      %v1036 = vmul.f32 %v631, %v631
      %v1037 = vmul.f32 %v634, %v634
      %v1038 = vmul.f32 %v637, %v637
      %v1039 = vmul.f32 %v640, %v640
      %v1040 = vmul.f32 %v643, %v643
      %v1041 = vmul.f32 %v646, %v646
      %v1042 = vmul.f32 %v649, %v649
      %v1043 = vmul.f32 %v652, %v652
      %v1044 = vmul.f32 %v655, %v655
      %v1045 = vmul.f32 %v658, %v658
      %v1046 = vmul.f32 %v661, %v661
      %v1047 = vmul.f32 %v664, %v664
      %v1048 = vmul.f32 %v667, %v667
      %v1049 = vmul.f32 %v670, %v670
      %v1050 = vmul.f32 %v673, %v673
      %v1051 = vmul.f32 %v676, %v676
      %v1052 = vmul.f32 %v679, %v679
      %v1053 = vmul.f32 %v682, %v682
      %v1054 = vmul.f32 %v685, %v685
      %v1055 = vmul.f32 %v688, %v688
      %v1056 = vmul.f32 %v691, %v691
      %v1057 = vmul.f32 %v694, %v694
      %v1058 = vmul.f32 %v697, %v697
      %v1059 = vmul.f32 %v700, %v700
      %v1060 = vmul.f32 %v703, %v703
      %v1061 = vmul.f32 %v706, %v706
      %v1062 = vmul.f32 %v709, %v709
      %v1063 = vmul.f32 %v712, %v712
      %v1064 = vmul.f32 %v715, %v715
      %v1065 = vmul.f32 %v718, %v718
      %v1066 = vmul.f32 %v721, %v721
      %v1067 = vmul.f32 %v724, %v724
      %v1068 = vmul.f32 %v727, %v727
      %v1069 = vmul.f32 %v730, %v730
      %v1070 = vmul.f32 %v733, %v733
      %v1071 = vmul.f32 %v736, %v736
      %v1072 = vmul.f32 %v739, %v739
      %v1073 = vmul.f32 %v742, %v742
      %v1074 = vsel %vm812, %v1010, 0.0
      %v1075 = vsel %vm812, %v1011, 0.0
      %v1076 = vadd.f32 %v1074, %v1075
      %v1077 = vsel %vm812, %v1012, 0.0
      %v1078 = vadd.f32 %v1076, %v1077
      %v1079 = vsel %vm812, %v1013, 0.0
      %v1080 = vadd.f32 %v1078, %v1079
      %v1081 = vsel %vm812, %v1014, 0.0
      %v1082 = vadd.f32 %v1080, %v1081
      %v1083 = vsel %vm812, %v1015, 0.0
      %v1084 = vadd.f32 %v1082, %v1083
      %v1085 = vsel %vm812, %v1016, 0.0
      %v1086 = vadd.f32 %v1084, %v1085
      %v1087 = vsel %vm812, %v1017, 0.0
      %v1088 = vadd.f32 %v1086, %v1087
      %v1089 = vsel %vm812, %v1018, 0.0
      %v1090 = vadd.f32 %v1088, %v1089
      %v1091 = vsel %vm812, %v1019, 0.0
      %v1092 = vadd.f32 %v1090, %v1091
      %v1093 = vsel %vm812, %v1020, 0.0
      %v1094 = vadd.f32 %v1092, %v1093
      %v1095 = vsel %vm812, %v1021, 0.0
      %v1096 = vadd.f32 %v1094, %v1095
      %v1097 = vsel %vm812, %v1022, 0.0
      %v1098 = vadd.f32 %v1096, %v1097
      %v1099 = vsel %vm812, %v1023, 0.0
      %v1100 = vadd.f32 %v1098, %v1099
      %v1101 = vsel %vm812, %v1024, 0.0
      %v1102 = vadd.f32 %v1100, %v1101
      %v1103 = vsel %vm812, %v1025, 0.0
      %v1104 = vadd.f32 %v1102, %v1103
      %v1105 = vsel %vm812, %v1026, 0.0
      %v1106 = vadd.f32 %v1104, %v1105
      %v1107 = vsel %vm812, %v1027, 0.0
      %v1108 = vadd.f32 %v1106, %v1107
      %v1109 = vsel %vm812, %v1028, 0.0
      %v1110 = vadd.f32 %v1108, %v1109
      %v1111 = vsel %vm812, %v1029, 0.0
      %v1112 = vadd.f32 %v1110, %v1111
      %v1113 = vsel %vm812, %v1030, 0.0
      %v1114 = vadd.f32 %v1112, %v1113
      %v1115 = vsel %vm812, %v1031, 0.0
      %v1116 = vadd.f32 %v1114, %v1115
      %v1117 = vsel %vm812, %v1032, 0.0
      %v1118 = vadd.f32 %v1116, %v1117
      %v1119 = vsel %vm812, %v1033, 0.0
      %v1120 = vadd.f32 %v1118, %v1119
      %v1121 = vsel %vm812, %v1034, 0.0
      %v1122 = vadd.f32 %v1120, %v1121
      %v1123 = vsel %vm812, %v1035, 0.0
      %v1124 = vadd.f32 %v1122, %v1123
      %v1125 = vsel %vm812, %v1036, 0.0
      %v1126 = vadd.f32 %v1124, %v1125
      %v1127 = vsel %vm812, %v1037, 0.0
      %v1128 = vadd.f32 %v1126, %v1127
      %v1129 = vsel %vm812, %v1038, 0.0
      %v1130 = vadd.f32 %v1128, %v1129
      %v1131 = vsel %vm812, %v1039, 0.0
      %v1132 = vadd.f32 %v1130, %v1131
      %v1133 = vsel %vm812, %v1040, 0.0
      %v1134 = vadd.f32 %v1132, %v1133
      %v1135 = vsel %vm812, %v1041, 0.0
      %v1136 = vadd.f32 %v1134, %v1135
      %v1137 = vsel %vm812, %v1042, 0.0
      %v1138 = vadd.f32 %v1136, %v1137
      %v1139 = vsel %vm812, %v1043, 0.0
      %v1140 = vadd.f32 %v1138, %v1139
      %v1141 = vsel %vm812, %v1044, 0.0
      %v1142 = vadd.f32 %v1140, %v1141
      %v1143 = vsel %vm812, %v1045, 0.0
      %v1144 = vadd.f32 %v1142, %v1143
      %v1145 = vsel %vm812, %v1046, 0.0
      %v1146 = vadd.f32 %v1144, %v1145
      %v1147 = vsel %vm812, %v1047, 0.0
      %v1148 = vadd.f32 %v1146, %v1147
      %v1149 = vsel %vm812, %v1048, 0.0
      %v1150 = vadd.f32 %v1148, %v1149
      %v1151 = vsel %vm812, %v1049, 0.0
      %v1152 = vadd.f32 %v1150, %v1151
      %v1153 = vsel %vm812, %v1050, 0.0
      %v1154 = vadd.f32 %v1152, %v1153
      %v1155 = vsel %vm812, %v1051, 0.0
      %v1156 = vadd.f32 %v1154, %v1155
      %v1157 = vsel %vm812, %v1052, 0.0
      %v1158 = vadd.f32 %v1156, %v1157
      %v1159 = vsel %vm812, %v1053, 0.0
      %v1160 = vadd.f32 %v1158, %v1159
      %v1161 = vsel %vm812, %v1054, 0.0
      %v1162 = vadd.f32 %v1160, %v1161
      %v1163 = vsel %vm812, %v1055, 0.0
      %v1164 = vadd.f32 %v1162, %v1163
      %v1165 = vsel %vm812, %v1056, 0.0
      %v1166 = vadd.f32 %v1164, %v1165
      %v1167 = vsel %vm812, %v1057, 0.0
      %v1168 = vadd.f32 %v1166, %v1167
      %v1169 = vsel %vm812, %v1058, 0.0
      %v1170 = vadd.f32 %v1168, %v1169
      %v1171 = vsel %vm812, %v1059, 0.0
      %v1172 = vadd.f32 %v1170, %v1171
      %v1173 = vsel %vm812, %v1060, 0.0
      %v1174 = vadd.f32 %v1172, %v1173
      %v1175 = vsel %vm812, %v1061, 0.0
      %v1176 = vadd.f32 %v1174, %v1175
      %v1177 = vsel %vm812, %v1062, 0.0
      %v1178 = vadd.f32 %v1176, %v1177
      %v1179 = vsel %vm812, %v1063, 0.0
      %v1180 = vadd.f32 %v1178, %v1179
      %v1181 = vsel %vm812, %v1064, 0.0
      %v1182 = vadd.f32 %v1180, %v1181
      %v1183 = vsel %vm812, %v1065, 0.0
      %v1184 = vadd.f32 %v1182, %v1183
      %v1185 = vsel %vm812, %v1066, 0.0
      %v1186 = vadd.f32 %v1184, %v1185
      %v1187 = vsel %vm812, %v1067, 0.0
      %v1188 = vadd.f32 %v1186, %v1187
      %v1189 = vsel %vm812, %v1068, 0.0
      %v1190 = vadd.f32 %v1188, %v1189
      %v1191 = vsel %vm812, %v1069, 0.0
      %v1192 = vadd.f32 %v1190, %v1191
      %v1193 = vsel %vm812, %v1070, 0.0
      %v1194 = vadd.f32 %v1192, %v1193
      %v1195 = vsel %vm812, %v1071, 0.0
      %v1196 = vadd.f32 %v1194, %v1195
      %v1197 = vsel %vm812, %v1072, 0.0
      %v1198 = vadd.f32 %v1196, %v1197
      %v1199 = vsel %vm812, %v1073, 0.0
      %v1200 = vadd.f32 %v1198, %v1199
      %v1201 = vrot.slane %v1200, 4
      %v1202 = vadd.f32 %v1200, %v1201
      %v1203 = vrot.slane %v1202, 2
      %v1204 = vadd.f32 %v1202, %v1203
      %v1205 = vrot.slane %v1204, 1
      %v1206 = vadd.f32 %v1204, %v1205
      %vm1207 = vcmask 1040384
      %v1208 = vsel %vm1207, %v1009, %v1206
      %vm1209 = vcmask 58368
      %1210 = vst.msk [vmem:[%s275] sm:$0x3] %vm1209, %v1208
      %s1211 = smul.u32 64, %s21
      %p1212 = scmp.lt.s32.totalorder %s20, 3
      %s1213 = scalar_select %p1212, %s20, 3
      %p1214 = scmp.lt.s32.totalorder %s1211, 63
      %s1215 = scalar_select %p1214, %s1211, 63
      %s1216 = smul.addr %s1213, 64
      %s1217 = sadd.s32 %s1215, %s1216
      %s1218 = smul.addr %s1217, 8
      %s1219 = scalar_lea.vmem %s3, %s1218
      %p1220 = scmp.lt.s32.totalorder %s20, 3
      %s1221 = scalar_select %p1220, %s20, 3
      %p1222 = scmp.lt.s32.totalorder %s21, 0
      %s1223 = scalar_select %p1222, %s21, 0
      %s1224 = sadd.s32 %s1223, %s1221
      %s1225 = smul.addr %s1224, 2
      %s1226 = scalar_lea.vmem %s4, %s1225
      // Predicated region
      $region33: #{conv_unit_transpose.2} parent=31 // pred_check
        %p1227 = pneg %p123
      $region34: #{conv_unit_transpose.2} parent=31 // pred_check_branch
        %1229 = sbr.rel (%p1227) target = $region36
      $region35: #{conv_unit_transpose.2} parent=31 // pred_region
        %s1230 = smul.u32 64, %s21
      $region36: #{conv_unit_transpose.2} parent=31 // pred_fallthru
        _
      // Predicated region
      $region37: #{conv_unit_transpose.2} parent=31 // pred_check
        %p1231 = pneg %p151
      $region38: #{conv_unit_transpose.2} parent=31 // pred_check_branch
        %1233 = sbr.rel (%p1231) target = $region40
      $region39: #{conv_unit_transpose.2} parent=31 // pred_region
        _
      $region40: #{conv_unit_transpose.2} parent=31 // pred_fallthru
        _
    $region32: #{conv_unit_transpose.2} parent=5 // pred_fallthru
      _
    %p1234 = scmp.le.s32.totalorder 2, %s11
    // Predicated region
    $region41: #{conv_unit_transpose.2} parent=5 // pred_check
      %p1235 = pneg %p1234
    $region42: #{conv_unit_transpose.2} parent=5 // pred_check_branch
      %1237 = sbr.rel (%p1235) target = $region44
    $region43: #{conv_unit_transpose.2} parent=5 // pred_region
      %s1238 = ssub.s32 %s11, 2
      // Predicated region
      $region45: #{conv_unit_transpose.2} parent=43 // pred_check
        %p1239 = pneg %p129
      $region46: #{conv_unit_transpose.2} parent=43 // pred_check_branch
        %1241 = sbr.rel (%p1239) target = $region48
      $region47: #{conv_unit_transpose.2} parent=43 // pred_region
        %s1242 = smul.u32 64, %s23
        %p1243 = scmp.lt.s32.totalorder %s22, 3
        %s1244 = scalar_select %p1243, %s22, 3
        %p1245 = scmp.lt.s32.totalorder %s1242, 63
        %s1246 = scalar_select %p1245, %s1242, 63
        %s1247 = smul.addr %s1244, 64
        %s1248 = sadd.s32 %s1246, %s1247
        %s1249 = smul.addr %s1248, 8
        %s1250 = scalar_lea.vmem %s3, %s1249
      $region48: #{conv_unit_transpose.2} parent=43 // pred_fallthru
        _
      // Predicated region
      $region49: #{conv_unit_transpose.2} parent=43 // pred_check
        %p1251 = pneg %p157
      $region50: #{conv_unit_transpose.2} parent=43 // pred_check_branch
        %1253 = sbr.rel (%p1251) target = $region52
      $region51: #{conv_unit_transpose.2} parent=43 // pred_region
        %p1254 = scmp.lt.s32.totalorder %s22, 3
        %s1255 = scalar_select %p1254, %s22, 3
        %p1256 = scmp.lt.s32.totalorder %s23, 0
        %s1257 = scalar_select %p1256, %s23, 0
        %s1258 = sadd.s32 %s1257, %s1255
        %s1259 = smul.addr %s1258, 2
        %s1260 = scalar_lea.vmem %s4, %s1259
      $region52: #{conv_unit_transpose.2} parent=43 // pred_fallthru
        _
    $region44: #{conv_unit_transpose.2} parent=5 // pred_fallthru
      _
  $region6: #{conv_unit_transpose.2} parent=0 // loop_footer
    %s15 = sadd.s32 1, %s11
  $region7: #{conv_unit_transpose.2} parent=0 // loop_footer_branch
    %10 = sbr.rel target = $region3
  $region8: #{conv_unit_transpose.2} parent=0 // loop_exit
    _

</llo_original>
